<compile_context>
chip_gen: v5e
topology: v5e:2x2
jax: 0.10.0
libtpu: 0.0.40
codegen_flags: <defaults>
</compile_context>

<pallas_src>
import math
import jax
import jax.numpy as jnp
from jax import lax
from jax.experimental import pallas as pl
from jax.experimental.pallas import tpu as pltpu

EPS = 1e-5  # args.norm_eps


def _rmsnorm(v, w):
    ms = jnp.mean(v * v, axis=-1, keepdims=True)
    return v * lax.rsqrt(ms + EPS) * w


def _silu(v):
    return v * (1.0 / (1.0 + jnp.exp(-v)))


def mixer_block_kernel(x_ref, cos_ref, sin_ref, mixnw_ref, a1_ref, c_ref, wo_ref,
                       ffnnw_ref, w13f_ref, w2f_ref, out_ref):
    Bb, S, D = x_ref.shape
    M = Bb * S
    H = w2f_ref.shape[0]

    x3 = x_ref[...].astype(jnp.float32)                     # (Bb, S, D)
    x2 = x3.reshape(M, D)                                   # merge leading dims (free)

    # ---------------- Mix branch ----------------
    xn2 = _rmsnorm(x2, mixnw_ref[...])                      # mix_norm(x), (M, D)

    # Rotary embedding: swapped[2k] = xn[2k+1], swapped[2k+1] = xn[2k] via lane rolls +
    # even/odd select; the sign (-sin on even lanes, +sin on odd lanes) is pre-folded
    # into the sin table host-side.
    lane = lax.broadcasted_iota(jnp.int32, (M, D), 1)
    swapped = jnp.where((lane & 1) == 0,
                        pltpu.roll(xn2, D - 1, axis=1),     # x[i+1] at even lanes
                        pltpu.roll(xn2, 1, axis=1))         # x[i-1] at odd lanes
    xn3 = xn2.reshape(Bb, S, D)
    sw3 = swapped.reshape(Bb, S, D)
    xr3 = xn3 * cos_ref[...] + sw3 * sin_ref[...]           # (Bb, S, D)

    # Collapsed token-mix (lane-dense (Bb, S, S_u, D) intermediate, D last):
    #   m[b,s,d] = xr[b,s,d] * sum_u silu(xr[b,s,d] * A1[s,u]) * C[s,u]
    a1b = lax.broadcast_in_dim(a1_ref[...], (Bb, S, S, D), (1, 2))
    cb = lax.broadcast_in_dim(c_ref[...], (Bb, S, S, D), (1, 2))
    xrb = lax.broadcast_in_dim(xr3, (Bb, S, S, D), (0, 1, 3))
    g = _silu(xrb * a1b) * cb                               # (Bb, S, S_u, D)
    m3 = xr3 * jnp.sum(g, axis=2)                           # (Bb, S, D)
    m2 = m3.reshape(M, D)

    mix_out = jnp.dot(m2.astype(wo_ref.dtype), wo_ref[...],
                      preferred_element_type=jnp.float32)   # wo, (M, D)
    h = x2 + mix_out                                        # residual 1

    # ---------------- FFN branch ----------------
    hn = _rmsnorm(h, ffnnw_ref[...])                        # ffn_norm(h)
    f13 = jnp.dot(hn.astype(w13f_ref.dtype), w13f_ref[...],
                  preferred_element_type=jnp.float32)       # (M, 2H): [w1 | w3]
    f1 = f13[:, :H]
    f3 = f13[:, H:]
    gate = (_silu(f1) * f3).astype(w2f_ref.dtype)
    f = jnp.dot(gate, w2f_ref[...], preferred_element_type=jnp.float32)

    out_ref[...] = (h + f).reshape(Bb, S, D).astype(out_ref.dtype)   # residual 2


def _pick_block_b(B, S):
    """Largest batch block with Bb*S <= 256 rows, preferring >= 2 grid steps (v7x 2 TCs)."""
    cands = [bb for bb in range(1, B + 1) if B % bb == 0 and bb * S <= 256]
    if not cands:
        cands = [1]
    pref = [bb for bb in cands if B // bb >= 2]
    return max(pref) if pref else max(cands)


def mixer_block(x, cosA, sinA, mask, params, *, block_b=None):
    B, S, D = x.shape
    H = params['w1f'].shape[1]
    f32 = jnp.float32
    bf16 = jnp.bfloat16

    if block_b is None:
        block_b = _pick_block_b(B, S)
    assert B % block_b == 0
    grid_b = B // block_b

    # ---- tiny host-side folds (exact algebraic rewrites of the mix branch) ----
    cosI = jnp.repeat(cosA.astype(f32), 2, axis=1)                     # (S, D)
    sign = jnp.tile(jnp.array([-1.0, 1.0], f32), D // 2)               # -,+,-,+,...
    sinS = jnp.repeat(sinA.astype(f32), 2, axis=1) * sign[None, :]     # pre-signed sin
    A1 = (mask @ params['w1m']).astype(f32)                            # (S, S)
    A3 = mask @ params['w3m']                                          # (S, S)
    w2v = params['w2m'] @ params['wm'][0]                              # (S,)  wm folded into w2m
    C = (A3 * w2v[None, :]).astype(f32)                                # (S, S)

    w13f = jnp.concatenate([params['w1f'], params['w3f']], axis=1).astype(bf16)  # (D, 2H)
    w2f = params['w2f'].astype(bf16)                                   # (H, D)
    wo = params['wo'].astype(bf16)                                     # (D, D)
    mixnw = params['mix_norm_w'].astype(f32)                           # (1, D)
    ffnnw = params['ffn_norm_w'].astype(f32)                           # (1, D)

    def rep(shape):
        n = len(shape)
        return pl.BlockSpec(shape, lambda b, n=n: (0,) * n)

    in_specs = [
        pl.BlockSpec((block_b, S, D), lambda b: (b, 0, 0)),    # x
        rep((S, D)), rep((S, D)),                              # cos, signed sin
        rep((1, D)),                                           # mix_norm weight
        rep((S, S)), rep((S, S)),                              # A1, C (folded mix weights)
        rep((D, D)),                                           # wo (bf16)
        rep((1, D)),                                           # ffn_norm weight
        rep((D, 2 * H)), rep((H, D)),                          # w13f, w2f (bf16)
    ]
    out_spec = pl.BlockSpec((block_b, S, D), lambda b: (b, 0, 0))

    flops = 2 * B * S * (D * 2 * H + H * D + D * D) + 6 * B * S * S * D
    transc = B * S * (S * D + H) + 4 * B * S
    bytes_acc = (2 * (D * 2 * H + H * D + D * D)               # bf16 weights
                 + 4 * (2 * S * D + 2 * D + 2 * S * S)         # f32 tables / folded weights
                 + 4 * 2 * B * S * D)                          # x in + out (f32)

    return pl.pallas_call(
        mixer_block_kernel,
        out_shape=jax.ShapeDtypeStruct((B, S, D), x.dtype),
        grid_spec=pltpu.PrefetchScalarGridSpec(
            num_scalar_prefetch=0, grid=(grid_b,),
            in_specs=in_specs, out_specs=out_spec),
        compiler_params=pltpu.CompilerParams(
            dimension_semantics=("parallel",),
            vmem_limit_bytes=32 * 1024 * 1024),
        cost_estimate=pl.CostEstimate(flops=flops, transcendentals=transc,
                                      bytes_accessed=bytes_acc),
    )(x, cosI, sinS, mixnw, A1, C, wo, ffnnw, w13f, w2f)


def reference(x, cosA, sinA, mask, p):
    """Pure-JAX mirror of the PyTorch forward (unfactored)."""
    def rms(v, w):
        return v * lax.rsqrt(jnp.mean(v * v, -1, keepdims=True) + EPS) * w

    B, S, D = x.shape
    xn = rms(x, p['mix_norm_w'][0])
    xe, xo = xn[..., 0::2], xn[..., 1::2]
    re = xe * cosA - xo * sinA
    im = xe * sinA + xo * cosA
    xr = jnp.stack([re, im], axis=-1).reshape(B, S, D)

    xt = jnp.swapaxes(xr, 1, 2)[..., None] * mask          # (B, D, S, S)
    h = jax.nn.silu(xt @ p['w1m']) * (xt @ p['w3m'])
    z = h @ p['w2m']
    mo = (z @ p['wm'].T)[..., 0]                           # (B, D, S)
    h_res = x + jnp.swapaxes(mo, 1, 2) @ p['wo']

    hn = rms(h_res, p['ffn_norm_w'][0])
    f = (jax.nn.silu(hn @ p['w1f']) * (hn @ p['w3f'])) @ p['w2f']
    return h_res + f


if __name__ == "__main__":
    # small ModelArgs: dim=128, max_seq_len=8 (seqlen == max_seq_len),
    # ffn_dim_multiplier=4, max_batch_size=2
    B, S, D, MULT = 2, 8, 128, 4
    H = D * MULT

    key = jax.random.PRNGKey(0)
    ks = jax.random.split(key, 10)

    def lin(k, fan_in, shape):
        bound = 1.0 / math.sqrt(fan_in)
        return jax.random.uniform(k, shape, jnp.float32, -bound, bound)

    def q_bf16(w):  # the kernel streams these in bf16; round once so kernel & ref match
        return w.astype(jnp.bfloat16).astype(jnp.float32)

    # weights stored as (in, out): y = x @ W
    params = dict(
        w1m=lin(ks[0], S, (S, S)),
        w2m=lin(ks[1], S, (S, S)),
        w3m=lin(ks[2], S, (S, S)),
        wm=lin(ks[3], S, (1, S)),            # Linear(S, 1) weight, row layout
        wo=q_bf16(lin(ks[4], D, (D, D))),
        w1f=q_bf16(lin(ks[5], D, (D, H))),
        w2f=q_bf16(lin(ks[6], H, (H, D))),
        w3f=q_bf16(lin(ks[7], D, (D, H))),
        mix_norm_w=jnp.ones((1, D), jnp.float32),
        ffn_norm_w=jnp.ones((1, D), jnp.float32),
    )

    x = jax.random.normal(ks[8], (B, S, D), jnp.float32)

    # rotary tables (freqs_cis equivalent): angles (S, D/2)
    theta = 10000.0
    inv_freq = 1.0 / (theta ** (jnp.arange(0, D, 2, dtype=jnp.float32) / D))
    ang = jnp.arange(S, dtype=jnp.float32)[:, None] * inv_freq[None, :]
    cosA, sinA = jnp.cos(ang), jnp.sin(ang)

    # multiplicative (causal) mask, shape (S, S), broadcast over (B, D, S, S)
    mask = jnp.tril(jnp.ones((S, S), jnp.float32))

    out = jax.block_until_ready(mixer_block(x, cosA, sinA, mask, params))

    ref = reference(x, cosA, sinA, mask, params)
    assert out.shape == (B, S, D)
    err = float(jnp.max(jnp.abs(out - ref)))
    assert jnp.allclose(out, ref, rtol=2e-2, atol=2e-2), f"max abs err {err}"
    print("KERNEL_OK")
</pallas_src>

<mosaic_0001>
module attributes {stable_mosaic.version = 11 : i64} {
  func.func @mixer_block_kernel(%arg0: i32, %arg1: memref<1x8x128xf32, #tpu.memory_space<vmem>>, %arg2: memref<8x128xf32, #tpu.memory_space<vmem>>, %arg3: memref<8x128xf32, #tpu.memory_space<vmem>>, %arg4: memref<1x128xf32, #tpu.memory_space<vmem>>, %arg5: memref<8x8xf32, #tpu.memory_space<vmem>>, %arg6: memref<8x8xf32, #tpu.memory_space<vmem>>, %arg7: memref<128x128xbf16, #tpu.memory_space<vmem>>, %arg8: memref<1x128xf32, #tpu.memory_space<vmem>>, %arg9: memref<128x1024xbf16, #tpu.memory_space<vmem>>, %arg10: memref<512x128xbf16, #tpu.memory_space<vmem>>, %arg11: memref<1x8x128xf32, #tpu.memory_space<vmem>>) attributes {dimension_semantics = [#tpu.dimension_semantics<parallel>], iteration_bounds = array<i64: 2>, scalar_prefetch = 0 : i64, scratch_operands = 0 : i64, tpu.core_type = #tpu.core_type<tc>, window_params = [{transform_indices = @transform_0, window_bounds = array<i64: 1, 8, 128>}, {pipeline_mode = #tpu.pipeline_mode<synchronous>, transform_indices = @transform_1, window_bounds = array<i64: 8, 128>}, {pipeline_mode = #tpu.pipeline_mode<synchronous>, transform_indices = @transform_2, window_bounds = array<i64: 8, 128>}, {pipeline_mode = #tpu.pipeline_mode<synchronous>, transform_indices = @transform_3, window_bounds = array<i64: 1, 128>}, {pipeline_mode = #tpu.pipeline_mode<synchronous>, transform_indices = @transform_4, window_bounds = array<i64: 8, 8>}, {pipeline_mode = #tpu.pipeline_mode<synchronous>, transform_indices = @transform_5, window_bounds = array<i64: 8, 8>}, {pipeline_mode = #tpu.pipeline_mode<synchronous>, transform_indices = @transform_6, window_bounds = array<i64: 128, 128>}, {pipeline_mode = #tpu.pipeline_mode<synchronous>, transform_indices = @transform_7, window_bounds = array<i64: 1, 128>}, {pipeline_mode = #tpu.pipeline_mode<synchronous>, transform_indices = @transform_8, window_bounds = array<i64: 128, 1024>}, {pipeline_mode = #tpu.pipeline_mode<synchronous>, transform_indices = @transform_9, window_bounds = array<i64: 512, 128>}, {transform_indices = @transform_10, window_bounds = array<i64: 1, 8, 128>}]} {
    %c0 = arith.constant 0 : index
    %c0_0 = arith.constant 0 : index
    %c0_1 = arith.constant 0 : index
    %0 = vector.load %arg1[%c0, %c0_0, %c0_1] : memref<1x8x128xf32, #tpu.memory_space<vmem>>, vector<1x8x128xf32>
    %1 = vector.shape_cast %0 : vector<1x8x128xf32> to vector<8x128xf32>
    %c0_2 = arith.constant 0 : index
    %c0_3 = arith.constant 0 : index
    %2 = vector.load %arg4[%c0_2, %c0_3] : memref<1x128xf32, #tpu.memory_space<vmem>>, vector<1x128xf32>
    %3 = arith.mulf %1, %1 : vector<8x128xf32>
    %cst = arith.constant dense<0.000000e+00> : vector<8xf32>
    %4 = vector.multi_reduction <add>, %3, %cst [1] : vector<8x128xf32> to vector<8xf32>
    %5 = vector.shape_cast %4 : vector<8xf32> to vector<8x1xf32>
    %cst_4 = arith.constant 1.280000e+02 : f32
    %6 = vector.broadcast %cst_4 : f32 to vector<8x1xf32>
    %7 = arith.divf %5, %6 : vector<8x1xf32>
    %cst_5 = arith.constant 9.99999974E-6 : f32
    %8 = vector.broadcast %cst_5 : f32 to vector<8x1xf32>
    %9 = arith.addf %7, %8 : vector<8x1xf32>
    %10 = math.rsqrt %9 : vector<8x1xf32>
    %11 = vector.broadcast %10 : vector<8x1xf32> to vector<8x128xf32>
    %12 = arith.mulf %1, %11 : vector<8x128xf32>
    %13 = vector.broadcast %2 : vector<1x128xf32> to vector<8x128xf32>
    %14 = arith.mulf %12, %13 : vector<8x128xf32>
    %15 = tpu.iota {dimensions = array<i32: 1>} : vector<8x128xi32>
    %c1_i32 = arith.constant 1 : i32
    %16 = vector.broadcast %c1_i32 : i32 to vector<8x128xi32>
    %17 = arith.andi %15, %16 : vector<8x128xi32>
    %c0_i32 = arith.constant 0 : i32
    %18 = vector.broadcast %c0_i32 : i32 to vector<8x128xi32>
    %19 = arith.cmpi eq, %17, %18 : vector<8x128xi32>
    %c127_i32 = arith.constant 127 : i32
    %20 = tpu.dynamic_rotate %14 by %c127_i32 dim 1 : vector<8x128xf32>, i32 -> vector<8x128xf32>
    %c1_i32_6 = arith.constant 1 : i32
    %21 = tpu.dynamic_rotate %14 by %c1_i32_6 dim 1 : vector<8x128xf32>, i32 -> vector<8x128xf32>
    %22 = arith.select %19, %20, %21 : vector<8x128xi1>, vector<8x128xf32>
    %23 = vector.shape_cast %14 : vector<8x128xf32> to vector<1x8x128xf32>
    %24 = vector.shape_cast %22 : vector<8x128xf32> to vector<1x8x128xf32>
    %c0_7 = arith.constant 0 : index
    %c0_8 = arith.constant 0 : index
    %25 = vector.load %arg2[%c0_7, %c0_8] : memref<8x128xf32, #tpu.memory_space<vmem>>, vector<8x128xf32>
    %26 = vector.shape_cast %25 : vector<8x128xf32> to vector<1x8x128xf32>
    %27 = arith.mulf %23, %26 : vector<1x8x128xf32>
    %c0_9 = arith.constant 0 : index
    %c0_10 = arith.constant 0 : index
    %28 = vector.load %arg3[%c0_9, %c0_10] : memref<8x128xf32, #tpu.memory_space<vmem>>, vector<8x128xf32>
    %29 = vector.shape_cast %28 : vector<8x128xf32> to vector<1x8x128xf32>
    %30 = arith.mulf %24, %29 : vector<1x8x128xf32>
    %31 = arith.addf %27, %30 : vector<1x8x128xf32>
    %c0_11 = arith.constant 0 : index
    %c0_12 = arith.constant 0 : index
    %32 = vector.load %arg5[%c0_11, %c0_12] : memref<8x8xf32, #tpu.memory_space<vmem>>, vector<8x8xf32>
    %33 = vector.shape_cast %32 : vector<8x8xf32> to vector<1x8x8x1xf32>
    %34 = vector.broadcast %33 : vector<1x8x8x1xf32> to vector<1x8x8x128xf32>
    %c0_13 = arith.constant 0 : index
    %c0_14 = arith.constant 0 : index
    %35 = vector.load %arg6[%c0_13, %c0_14] : memref<8x8xf32, #tpu.memory_space<vmem>>, vector<8x8xf32>
    %36 = vector.shape_cast %35 : vector<8x8xf32> to vector<1x8x8x1xf32>
    %37 = vector.broadcast %36 : vector<1x8x8x1xf32> to vector<1x8x8x128xf32>
    %38 = vector.shape_cast %31 : vector<1x8x128xf32> to vector<1x8x1x128xf32>
    %39 = vector.broadcast %38 : vector<1x8x1x128xf32> to vector<1x8x8x128xf32>
    %40 = arith.mulf %39, %34 : vector<1x8x8x128xf32>
    %cst_15 = arith.constant 0.000000e+00 : f32
    %41 = vector.broadcast %cst_15 : f32 to vector<1x8x8x128xf32>
    %42 = arith.subf %41, %40 : vector<1x8x8x128xf32>
    %43 = math.exp %42 : vector<1x8x8x128xf32>
    %cst_16 = arith.constant 1.000000e+00 : f32
    %44 = vector.broadcast %cst_16 : f32 to vector<1x8x8x128xf32>
    %45 = arith.addf %44, %43 : vector<1x8x8x128xf32>
    %cst_17 = arith.constant 1.000000e+00 : f32
    %46 = vector.broadcast %cst_17 : f32 to vector<1x8x8x128xf32>
    %47 = arith.divf %46, %45 : vector<1x8x8x128xf32>
    %48 = arith.mulf %40, %47 : vector<1x8x8x128xf32>
    %49 = arith.mulf %48, %37 : vector<1x8x8x128xf32>
    %cst_18 = arith.constant dense<0.000000e+00> : vector<1x8x128xf32>
    %50 = vector.multi_reduction <add>, %49, %cst_18 [2] : vector<1x8x8x128xf32> to vector<1x8x128xf32>
    %51 = arith.mulf %31, %50 : vector<1x8x128xf32>
    %52 = vector.shape_cast %51 : vector<1x8x128xf32> to vector<8x128xf32>
    %53 = arith.truncf %52 : vector<8x128xf32> to vector<8x128xbf16>
    %c0_19 = arith.constant 0 : index
    %c0_20 = arith.constant 0 : index
    %54 = vector.load %arg7[%c0_19, %c0_20] : memref<128x128xbf16, #tpu.memory_space<vmem>>, vector<128x128xbf16>
    %cst_21 = arith.constant dense<0.000000e+00> : vector<8x128xf32>
    %55 = tpu.matmul %53, %54, %cst_21 {dimension_numbers = #tpu.dot_dimension_numbers<[1], [0], [0], [1], [0, 0, 1, 1], [], []>} : vector<8x128xbf16>, vector<128x128xbf16>, vector<8x128xf32> -> vector<8x128xf32>
    %56 = arith.addf %1, %55 : vector<8x128xf32>
    %c0_22 = arith.constant 0 : index
    %c0_23 = arith.constant 0 : index
    %57 = vector.load %arg8[%c0_22, %c0_23] : memref<1x128xf32, #tpu.memory_space<vmem>>, vector<1x128xf32>
    %58 = arith.mulf %56, %56 : vector<8x128xf32>
    %cst_24 = arith.constant dense<0.000000e+00> : vector<8xf32>
    %59 = vector.multi_reduction <add>, %58, %cst_24 [1] : vector<8x128xf32> to vector<8xf32>
    %60 = vector.shape_cast %59 : vector<8xf32> to vector<8x1xf32>
    %cst_25 = arith.constant 1.280000e+02 : f32
    %61 = vector.broadcast %cst_25 : f32 to vector<8x1xf32>
    %62 = arith.divf %60, %61 : vector<8x1xf32>
    %cst_26 = arith.constant 9.99999974E-6 : f32
    %63 = vector.broadcast %cst_26 : f32 to vector<8x1xf32>
    %64 = arith.addf %62, %63 : vector<8x1xf32>
    %65 = math.rsqrt %64 : vector<8x1xf32>
    %66 = vector.broadcast %65 : vector<8x1xf32> to vector<8x128xf32>
    %67 = arith.mulf %56, %66 : vector<8x128xf32>
    %68 = vector.broadcast %57 : vector<1x128xf32> to vector<8x128xf32>
    %69 = arith.mulf %67, %68 : vector<8x128xf32>
    %70 = arith.truncf %69 : vector<8x128xf32> to vector<8x128xbf16>
    %c0_27 = arith.constant 0 : index
    %c0_28 = arith.constant 0 : index
    %71 = vector.load %arg9[%c0_27, %c0_28] : memref<128x1024xbf16, #tpu.memory_space<vmem>>, vector<128x1024xbf16>
    %cst_29 = arith.constant dense<0.000000e+00> : vector<8x1024xf32>
    %72 = tpu.matmul %70, %71, %cst_29 {dimension_numbers = #tpu.dot_dimension_numbers<[1], [0], [0], [1], [0, 0, 1, 1], [], []>} : vector<8x128xbf16>, vector<128x1024xbf16>, vector<8x1024xf32> -> vector<8x1024xf32>
    %73 = vector.extract_strided_slice %72 {offsets = [0, 0], sizes = [8, 512], strides = [1, 1]} : vector<8x1024xf32> to vector<8x512xf32>
    %74 = vector.extract_strided_slice %72 {offsets = [0, 512], sizes = [8, 512], strides = [1, 1]} : vector<8x1024xf32> to vector<8x512xf32>
    %cst_30 = arith.constant 0.000000e+00 : f32
    %75 = vector.broadcast %cst_30 : f32 to vector<8x512xf32>
    %76 = arith.subf %75, %73 : vector<8x512xf32>
    %77 = math.exp %76 : vector<8x512xf32>
    %cst_31 = arith.constant 1.000000e+00 : f32
    %78 = vector.broadcast %cst_31 : f32 to vector<8x512xf32>
    %79 = arith.addf %78, %77 : vector<8x512xf32>
    %cst_32 = arith.constant 1.000000e+00 : f32
    %80 = vector.broadcast %cst_32 : f32 to vector<8x512xf32>
    %81 = arith.divf %80, %79 : vector<8x512xf32>
    %82 = arith.mulf %73, %81 : vector<8x512xf32>
    %83 = arith.mulf %82, %74 : vector<8x512xf32>
    %84 = arith.truncf %83 : vector<8x512xf32> to vector<8x512xbf16>
    %c0_33 = arith.constant 0 : index
    %c0_34 = arith.constant 0 : index
    %85 = vector.load %arg10[%c0_33, %c0_34] : memref<512x128xbf16, #tpu.memory_space<vmem>>, vector<512x128xbf16>
    %cst_35 = arith.constant dense<0.000000e+00> : vector<8x128xf32>
    %86 = tpu.matmul %84, %85, %cst_35 {dimension_numbers = #tpu.dot_dimension_numbers<[1], [0], [0], [1], [0, 0, 1, 1], [], []>} : vector<8x512xbf16>, vector<512x128xbf16>, vector<8x128xf32> -> vector<8x128xf32>
    %87 = arith.addf %56, %86 : vector<8x128xf32>
    %88 = vector.shape_cast %87 : vector<8x128xf32> to vector<1x8x128xf32>
    %c0_36 = arith.constant 0 : index
    %c0_37 = arith.constant 0 : index
    %c0_38 = arith.constant 0 : index
    %89 = vector.load %arg11[%c0_36, %c0_37, %c0_38] : memref<1x8x128xf32, #tpu.memory_space<vmem>>, vector<1x8x128xf32>
    tpu.vector_store %arg11[%c0_36, %c0_37, %c0_38], %88 {strides = array<i32>} : memref<1x8x128xf32, #tpu.memory_space<vmem>>, vector<1x8x128xf32>,
    return
  }
  func.func @transform_0(%arg0: i32) -> (i32, i32, i32) {
    %c0_i32 = arith.constant 0 : i32
    %c0_i32_0 = arith.constant 0 : i32
    %c0_i32_1 = arith.constant 0 : i32
    return %arg0, %c0_i32, %c0_i32_0 : i32, i32, i32
  }
  func.func @transform_1(%arg0: i32) -> (i32, i32) {
    %c0_i32 = arith.constant 0 : i32
    %c0_i32_0 = arith.constant 0 : i32
    %c0_i32_1 = arith.constant 0 : i32
    return %c0_i32, %c0_i32_0 : i32, i32
  }
  func.func @transform_2(%arg0: i32) -> (i32, i32) {
    %c0_i32 = arith.constant 0 : i32
    %c0_i32_0 = arith.constant 0 : i32
    %c0_i32_1 = arith.constant 0 : i32
    return %c0_i32, %c0_i32_0 : i32, i32
  }
  func.func @transform_3(%arg0: i32) -> (i32, i32) {
    %c0_i32 = arith.constant 0 : i32
    %c0_i32_0 = arith.constant 0 : i32
    %c0_i32_1 = arith.constant 0 : i32
    return %c0_i32, %c0_i32_0 : i32, i32
  }
  func.func @transform_4(%arg0: i32) -> (i32, i32) {
    %c0_i32 = arith.constant 0 : i32
    %c0_i32_0 = arith.constant 0 : i32
    %c0_i32_1 = arith.constant 0 : i32
    return %c0_i32, %c0_i32_0 : i32, i32
  }
  func.func @transform_5(%arg0: i32) -> (i32, i32) {
    %c0_i32 = arith.constant 0 : i32
    %c0_i32_0 = arith.constant 0 : i32
    %c0_i32_1 = arith.constant 0 : i32
    return %c0_i32, %c0_i32_0 : i32, i32
  }
  func.func @transform_6(%arg0: i32) -> (i32, i32) {
    %c0_i32 = arith.constant 0 : i32
    %c0_i32_0 = arith.constant 0 : i32
    %c0_i32_1 = arith.constant 0 : i32
    return %c0_i32, %c0_i32_0 : i32, i32
  }
  func.func @transform_7(%arg0: i32) -> (i32, i32) {
    %c0_i32 = arith.constant 0 : i32
    %c0_i32_0 = arith.constant 0 : i32
    %c0_i32_1 = arith.constant 0 : i32
    return %c0_i32, %c0_i32_0 : i32, i32
  }
  func.func @transform_8(%arg0: i32) -> (i32, i32) {
    %c0_i32 = arith.constant 0 : i32
    %c0_i32_0 = arith.constant 0 : i32
    %c0_i32_1 = arith.constant 0 : i32
    return %c0_i32, %c0_i32_0 : i32, i32
  }
  func.func @transform_9(%arg0: i32) -> (i32, i32) {
    %c0_i32 = arith.constant 0 : i32
    %c0_i32_0 = arith.constant 0 : i32
    %c0_i32_1 = arith.constant 0 : i32
    return %c0_i32, %c0_i32_0 : i32, i32
  }
  func.func @transform_10(%arg0: i32) -> (i32, i32, i32) {
    %c0_i32 = arith.constant 0 : i32
    %c0_i32_0 = arith.constant 0 : i32
    %c0_i32_1 = arith.constant 0 : i32
    return %arg0, %c0_i32, %c0_i32_0 : i32, i32, i32
  }
}

</mosaic_0001>

<llo_original>
// kernel: tpu_custom_call.1
$region0: #{tpu_custom_call.1}
  #allocation0 [shape = 'u32[]', space=smem, size = 0x4, offset = 0x4, fixed_abs, tag = 'smem constant byte address 0x4 - core index']
  #allocation1 [shape = 'u32[72,128]{1,0:T(1,128)}', space=vmem, size = 0x9000, scoped, tag = 'internal scratch']
  %s0 = inlined_call_operand.hbm [shape: f32[2,8,128], index: 0, kind: input, shape index: {}]
  %s1 = inlined_call_operand.hbm [shape: f32[8,128], index: 1, kind: input, shape index: {}]
  %s2 = inlined_call_operand.hbm [shape: f32[8,128], index: 2, kind: input, shape index: {}]
  %s3 = inlined_call_operand.vmem [shape: f32[1,128], index: 3, kind: input, shape index: {}]
  %s4 = inlined_call_operand.hbm [shape: f32[8,8], index: 4, kind: input, shape index: {}]
  %s5 = inlined_call_operand.hbm [shape: f32[8,8], index: 5, kind: input, shape index: {}]
  %s6 = inlined_call_operand.hbm [shape: bf16[128,128], index: 6, kind: input, shape index: {}]
  %s7 = inlined_call_operand.vmem [shape: f32[1,128], index: 7, kind: input, shape index: {}]
  %s8 = inlined_call_operand.hbm [shape: bf16[128,1024], index: 8, kind: input, shape index: {}]
  %s9 = inlined_call_operand.hbm [shape: bf16[512,128], index: 9, kind: input, shape index: {}]
  %s10 = inlined_call_operand.hbm [shape: f32[2,8,128], index: 10, kind: output, shape index: {}]
  %s11 = sld [smem:[#allocation0]]
  $region105: #{tpu_custom_call.1} parent=0
    _
  %s13 = ssub.s32 1, %s11
  %s14 = scalar_select 0, %s13, %s11
  $region1: #{tpu_custom_call.1} parent=0
    #allocation2 [shape = 'u8[8192]{0}', space=vmem, size = 0x2000, scoped, tag = 'input window, operand 0']
    #allocation3 [shape = 's32[2]{0}', space=sflag, size = 0x8, scoped, tag = 'scoped memory for tpu_custom_call.1']
    #allocation4 [shape = 's32[2]{0}', space=sflag, size = 0x8, scoped, tag = 'scoped memory for tpu_custom_call.1']
    #allocation5 [shape = 'u8[4096]{0}', space=vmem, size = 0x1000, scoped, tag = 'input window, operand 1, single buffered']
    #allocation6 [shape = 's32[1]{0}', space=sflag, size = 0x4, scoped, tag = 'scoped memory for tpu_custom_call.1']
    #allocation7 [shape = 'u8[4096]{0}', space=vmem, size = 0x1000, scoped, tag = 'input window, operand 2, single buffered']
    #allocation8 [shape = 'u8[4096]{0}', space=vmem, size = 0x1000, scoped, tag = 'input window, operand 4, single buffered']
    #allocation9 [shape = 's32[1]{0}', space=sflag, size = 0x4, scoped, tag = 'scoped memory for tpu_custom_call.1']
    #allocation10 [shape = 'u8[4096]{0}', space=vmem, size = 0x1000, scoped, tag = 'input window, operand 5, single buffered']
    #allocation11 [shape = 'u8[32768]{0}', space=vmem, size = 0x8000, scoped, tag = 'input window, operand 6, single buffered']
    #allocation12 [shape = 's32[1]{0}', space=sflag, size = 0x4, scoped, tag = 'scoped memory for tpu_custom_call.1']
    #allocation13 [shape = 'u8[262144]{0}', space=vmem, size = 0x40000, scoped, tag = 'input window, operand 8, single buffered']
    #allocation14 [shape = 'u8[131072]{0}', space=vmem, size = 0x20000, scoped, tag = 'input window, operand 9, single buffered']
    #allocation15 [shape = 's32[1]{0}', space=sflag, size = 0x4, scoped, tag = 'scoped memory for tpu_custom_call.1']
    #allocation16 [shape = 'u8[8192]{0}', space=vmem, size = 0x2000, scoped, tag = 'output window, operand 0']
    %15 = vsyncpa [#allocation3], 0
    %s16 = scalar_lea.sflag [#allocation3], 1
    %17 = vsyncpa %s16, 0
    %18 = vsyncpa [#allocation6], 0
    %19 = vsyncpa [#allocation9], 0
    %20 = vsyncpa [#allocation12], 0
    %21 = vsyncpa [#allocation15], 0
    %22 = vsyncpa [#allocation4], 0
    %s23 = scalar_lea.sflag [#allocation4], 1
    %24 = vsyncpa %s23, 0
    loop: start=0, step=1, limit=4
    $region2: #{tpu_custom_call.1} parent=1 // loop_pre_header
      _
    $region3: #{tpu_custom_call.1} parent=1 // loop_header
      %s26 = sphi 0, %s30
      %p27 = scmp.ge.s32.totalorder %s26, 4
      %s36 = sphi 0, %s38
      %s39 = sphi 0, %s36
      %s40 = sphi 0, %s39
      %s56 = sphi 0, %s40
      %s60 = sphi 0, %s60
      %s62 = sphi 0, %s60
      %s63 = sphi 0, %s62
      %s77 = sphi 0, %s63
      %s81 = sphi 0, %s81
      %s83 = sphi 0, %s81
      %s84 = sphi 0, %s83
      %s98 = sphi 0, %s84
      %s102 = sphi 0, %s102
      %s104 = sphi 0, %s102
      %s105 = sphi 0, %s104
      %s119 = sphi 0, %s105
      %s123 = sphi 0, %s123
      %s125 = sphi 0, %s123
      %s126 = sphi 0, %s125
      %s140 = sphi 0, %s126
      %s144 = sphi 0, %s144
      %s146 = sphi 0, %s144
      %s147 = sphi 0, %s146
      %s161 = sphi 0, %s147
      %s165 = sphi 0, %s165
      %s167 = sphi 0, %s165
      %s168 = sphi 0, %s167
      %s182 = sphi 0, %s168
      %s186 = sphi 0, %s186
      %s188 = sphi 0, %s186
      %s189 = sphi 0, %s188
      %s203 = sphi 0, %s189
      %s207 = sphi 0, %s207
      %s209 = sphi 0, %s207
      %s210 = sphi 0, %s209
      %s224 = sphi 0, %s210
      %s228 = sphi 0, %s228
      %s230 = sphi 0, %s228
      %s231 = sphi 0, %s230
      %s245 = sphi 0, %s231
      %s251 = sphi 0, %s253
      %s254 = sphi 0, %s251
      %s255 = sphi 0, %s254
      %s271 = sphi 0, %s255
    $region4: #{tpu_custom_call.1} parent=1 // loop_header_branch
      %29 = sbr.rel (%p27) target = $region8
    $region5: #{tpu_custom_call.1} parent=1 // loop_body
      %s31 = ssub.s32 %s26, 1
      %s32 = ssub.s32 %s26, 2
      %s33 = sadd.s32 %s26, 1
      %s34 = ssub.s32 %s26, %s33
      %p35 = scmp.eq.s32.totalorder %s34, 0
      %s37 = sadd.s32 %s36, 1
      %s38 = scalar_select %p35, %s36, %s37
      %p41 = pneg %p35
      %p42 = scmp.eq.s32.totalorder %s26, 1
      %p43 = por %p41, %p42
      %p44 = scmp.ne.s32.totalorder %s36, %s39
      %p45 = scmp.eq.s32.totalorder %s26, 0
      %p46 = por %p44, %p45
      %p47 = scmp.ne.s32.totalorder %s36, %s39
      %p48 = scmp.eq.s32.totalorder %s31, 1
      %p49 = por %p47, %p48
      %p50 = scmp.ne.s32.totalorder %s39, %s40
      %p51 = scmp.eq.s32.totalorder %s31, 0
      %p52 = por %p50, %p51
      %p53 = scmp.ne.s32.totalorder %s39, %s40
      %p54 = scmp.eq.s32.totalorder %s32, 1
      %p55 = por %p53, %p54
      %p57 = scmp.ne.s32.totalorder %s40, %s56
      %p58 = scmp.eq.s32.totalorder %s32, 0
      %p59 = por %p57, %p58
      %s61 = sadd.s32 %s60, 1
      %p64 = scmp.eq.s32.totalorder %s26, 1
      %p65 = scmp.ne.s32.totalorder %s60, %s62
      %p66 = scmp.eq.s32.totalorder %s26, 0
      %p67 = por %p65, %p66
      %p68 = scmp.ne.s32.totalorder %s60, %s62
      %p69 = scmp.eq.s32.totalorder %s31, 1
      %p70 = por %p68, %p69
      %p71 = scmp.ne.s32.totalorder %s62, %s63
      %p72 = scmp.eq.s32.totalorder %s31, 0
      %p73 = por %p71, %p72
      %p74 = scmp.ne.s32.totalorder %s62, %s63
      %p75 = scmp.eq.s32.totalorder %s32, 1
      %p76 = por %p74, %p75
      %p78 = scmp.ne.s32.totalorder %s63, %s77
      %p79 = scmp.eq.s32.totalorder %s32, 0
      %p80 = por %p78, %p79
      %s82 = sadd.s32 %s81, 1
      %p85 = scmp.eq.s32.totalorder %s26, 1
      %p86 = scmp.ne.s32.totalorder %s81, %s83
      %p87 = scmp.eq.s32.totalorder %s26, 0
      %p88 = por %p86, %p87
      %p89 = scmp.ne.s32.totalorder %s81, %s83
      %p90 = scmp.eq.s32.totalorder %s31, 1
      %p91 = por %p89, %p90
      %p92 = scmp.ne.s32.totalorder %s83, %s84
      %p93 = scmp.eq.s32.totalorder %s31, 0
      %p94 = por %p92, %p93
      %p95 = scmp.ne.s32.totalorder %s83, %s84
      %p96 = scmp.eq.s32.totalorder %s32, 1
      %p97 = por %p95, %p96
      %p99 = scmp.ne.s32.totalorder %s84, %s98
      %p100 = scmp.eq.s32.totalorder %s32, 0
      %p101 = por %p99, %p100
      %s103 = sadd.s32 %s102, 1
      %p106 = scmp.eq.s32.totalorder %s26, 1
      %p107 = scmp.ne.s32.totalorder %s102, %s104
      %p108 = scmp.eq.s32.totalorder %s26, 0
      %p109 = por %p107, %p108
      %p110 = scmp.ne.s32.totalorder %s102, %s104
      %p111 = scmp.eq.s32.totalorder %s31, 1
      %p112 = por %p110, %p111
      %p113 = scmp.ne.s32.totalorder %s104, %s105
      %p114 = scmp.eq.s32.totalorder %s31, 0
      %p115 = por %p113, %p114
      %p116 = scmp.ne.s32.totalorder %s104, %s105
      %p117 = scmp.eq.s32.totalorder %s32, 1
      %p118 = por %p116, %p117
      %p120 = scmp.ne.s32.totalorder %s105, %s119
      %p121 = scmp.eq.s32.totalorder %s32, 0
      %p122 = por %p120, %p121
      %s124 = sadd.s32 %s123, 1
      %p127 = scmp.eq.s32.totalorder %s26, 1
      %p128 = scmp.ne.s32.totalorder %s123, %s125
      %p129 = scmp.eq.s32.totalorder %s26, 0
      %p130 = por %p128, %p129
      %p131 = scmp.ne.s32.totalorder %s123, %s125
      %p132 = scmp.eq.s32.totalorder %s31, 1
      %p133 = por %p131, %p132
      %p134 = scmp.ne.s32.totalorder %s125, %s126
      %p135 = scmp.eq.s32.totalorder %s31, 0
      %p136 = por %p134, %p135
      %p137 = scmp.ne.s32.totalorder %s125, %s126
      %p138 = scmp.eq.s32.totalorder %s32, 1
      %p139 = por %p137, %p138
      %p141 = scmp.ne.s32.totalorder %s126, %s140
      %p142 = scmp.eq.s32.totalorder %s32, 0
      %p143 = por %p141, %p142
      %s145 = sadd.s32 %s144, 1
      %p148 = scmp.eq.s32.totalorder %s26, 1
      %p149 = scmp.ne.s32.totalorder %s144, %s146
      %p150 = scmp.eq.s32.totalorder %s26, 0
      %p151 = por %p149, %p150
      %p152 = scmp.ne.s32.totalorder %s144, %s146
      %p153 = scmp.eq.s32.totalorder %s31, 1
      %p154 = por %p152, %p153
      %p155 = scmp.ne.s32.totalorder %s146, %s147
      %p156 = scmp.eq.s32.totalorder %s31, 0
      %p157 = por %p155, %p156
      %p158 = scmp.ne.s32.totalorder %s146, %s147
      %p159 = scmp.eq.s32.totalorder %s32, 1
      %p160 = por %p158, %p159
      %p162 = scmp.ne.s32.totalorder %s147, %s161
      %p163 = scmp.eq.s32.totalorder %s32, 0
      %p164 = por %p162, %p163
      %s166 = sadd.s32 %s165, 1
      %p169 = scmp.eq.s32.totalorder %s26, 1
      %p170 = scmp.ne.s32.totalorder %s165, %s167
      %p171 = scmp.eq.s32.totalorder %s26, 0
      %p172 = por %p170, %p171
      %p173 = scmp.ne.s32.totalorder %s165, %s167
      %p174 = scmp.eq.s32.totalorder %s31, 1
      %p175 = por %p173, %p174
      %p176 = scmp.ne.s32.totalorder %s167, %s168
      %p177 = scmp.eq.s32.totalorder %s31, 0
      %p178 = por %p176, %p177
      %p179 = scmp.ne.s32.totalorder %s167, %s168
      %p180 = scmp.eq.s32.totalorder %s32, 1
      %p181 = por %p179, %p180
      %p183 = scmp.ne.s32.totalorder %s168, %s182
      %p184 = scmp.eq.s32.totalorder %s32, 0
      %p185 = por %p183, %p184
      %s187 = sadd.s32 %s186, 1
      %p190 = scmp.eq.s32.totalorder %s26, 1
      %p191 = scmp.ne.s32.totalorder %s186, %s188
      %p192 = scmp.eq.s32.totalorder %s26, 0
      %p193 = por %p191, %p192
      %p194 = scmp.ne.s32.totalorder %s186, %s188
      %p195 = scmp.eq.s32.totalorder %s31, 1
      %p196 = por %p194, %p195
      %p197 = scmp.ne.s32.totalorder %s188, %s189
      %p198 = scmp.eq.s32.totalorder %s31, 0
      %p199 = por %p197, %p198
      %p200 = scmp.ne.s32.totalorder %s188, %s189
      %p201 = scmp.eq.s32.totalorder %s32, 1
      %p202 = por %p200, %p201
      %p204 = scmp.ne.s32.totalorder %s189, %s203
      %p205 = scmp.eq.s32.totalorder %s32, 0
      %p206 = por %p204, %p205
      %s208 = sadd.s32 %s207, 1
      %p211 = scmp.eq.s32.totalorder %s26, 1
      %p212 = scmp.ne.s32.totalorder %s207, %s209
      %p213 = scmp.eq.s32.totalorder %s26, 0
      %p214 = por %p212, %p213
      %p215 = scmp.ne.s32.totalorder %s207, %s209
      %p216 = scmp.eq.s32.totalorder %s31, 1
      %p217 = por %p215, %p216
      %p218 = scmp.ne.s32.totalorder %s209, %s210
      %p219 = scmp.eq.s32.totalorder %s31, 0
      %p220 = por %p218, %p219
      %p221 = scmp.ne.s32.totalorder %s209, %s210
      %p222 = scmp.eq.s32.totalorder %s32, 1
      %p223 = por %p221, %p222
      %p225 = scmp.ne.s32.totalorder %s210, %s224
      %p226 = scmp.eq.s32.totalorder %s32, 0
      %p227 = por %p225, %p226
      %s229 = sadd.s32 %s228, 1
      %p232 = scmp.eq.s32.totalorder %s26, 1
      %p233 = scmp.ne.s32.totalorder %s228, %s230
      %p234 = scmp.eq.s32.totalorder %s26, 0
      %p235 = por %p233, %p234
      %p236 = scmp.ne.s32.totalorder %s228, %s230
      %p237 = scmp.eq.s32.totalorder %s31, 1
      %p238 = por %p236, %p237
      %p239 = scmp.ne.s32.totalorder %s230, %s231
      %p240 = scmp.eq.s32.totalorder %s31, 0
      %p241 = por %p239, %p240
      %p242 = scmp.ne.s32.totalorder %s230, %s231
      %p243 = scmp.eq.s32.totalorder %s32, 1
      %p244 = por %p242, %p243
      %p246 = scmp.ne.s32.totalorder %s231, %s245
      %p247 = scmp.eq.s32.totalorder %s32, 0
      %p248 = por %p246, %p247
      %s249 = ssub.s32 %s26, %s33
      %p250 = scmp.eq.s32.totalorder %s249, 0
      %s252 = sadd.s32 %s251, 1
      %s253 = scalar_select %p250, %s251, %s252
      %p256 = pneg %p250
      %p257 = scmp.eq.s32.totalorder %s26, 1
      %p258 = por %p256, %p257
      %p259 = scmp.ne.s32.totalorder %s251, %s254
      %p260 = scmp.eq.s32.totalorder %s26, 0
      %p261 = por %p259, %p260
      %p262 = scmp.ne.s32.totalorder %s251, %s254
      %p263 = scmp.eq.s32.totalorder %s31, 1
      %p264 = por %p262, %p263
      %p265 = scmp.ne.s32.totalorder %s254, %s255
      %p266 = scmp.eq.s32.totalorder %s31, 0
      %p267 = por %p265, %p266
      %p268 = scmp.ne.s32.totalorder %s254, %s255
      %p269 = scmp.eq.s32.totalorder %s32, 1
      %p270 = por %p268, %p269
      %p272 = scmp.ne.s32.totalorder %s255, %s271
      %p273 = scmp.eq.s32.totalorder %s32, 0
      %p274 = por %p272, %p273
      %p275 = scmp.le.s32.totalorder 1, %s26
      %p276 = scmp.lt.s32.totalorder %s26, 3
      %p277 = pnand %p275, %p276
      %p278 = pneg %p277
      // Predicated region
      $region9: #{tpu_custom_call.1} parent=5 // pred_check
        _
      $region10: #{tpu_custom_call.1} parent=5 // pred_check_branch
        %280 = sbr.rel (%p277) target = $region12
      $region11: #{tpu_custom_call.1} parent=5 // pred_region
        %s281 = ssub.s32 %s26, 1
        // Predicated region
        $region13: #{tpu_custom_call.1} parent=11 // pred_check
          %p282 = pneg %p73
        $region14: #{tpu_custom_call.1} parent=11 // pred_check_branch
          %284 = sbr.rel (%p282) target = $region16
        $region15: #{tpu_custom_call.1} parent=11 // pred_region
          %286 = vsyncadd [#allocation6], 0
          %s288 = sshll.u32 %s1, 4
          %s289 = int_to_ptr.hbm [resolvable:$true] %s288
          %s290 = sshll.u32 [#allocation5], 4
          %s291 = int_to_ptr.vmem [resolvable:$true] %s290
          %293 = dma.hbm_to_vmem [thread:$0]  %s289, 128, %s291, [#allocation6]
        $region16: #{tpu_custom_call.1} parent=11 // pred_fallthru
          _
        // Predicated region
        $region17: #{tpu_custom_call.1} parent=11 // pred_check
          %p294 = pneg %p94
        $region18: #{tpu_custom_call.1} parent=11 // pred_check_branch
          %296 = sbr.rel (%p294) target = $region20
        $region19: #{tpu_custom_call.1} parent=11 // pred_region
          %298 = vsyncadd [#allocation6], 0
          %s300 = sshll.u32 %s2, 4
          %s301 = int_to_ptr.hbm [resolvable:$true] %s300
          %s302 = sshll.u32 [#allocation7], 4
          %s303 = int_to_ptr.vmem [resolvable:$true] %s302
          %305 = dma.hbm_to_vmem [thread:$0]  %s301, 128, %s303, [#allocation6]
        $region20: #{tpu_custom_call.1} parent=11 // pred_fallthru
          _
        // Predicated region
        $region21: #{tpu_custom_call.1} parent=11 // pred_check
          %p306 = pneg %p115
        $region22: #{tpu_custom_call.1} parent=11 // pred_check_branch
          %308 = sbr.rel (%p306) target = $region24
        $region23: #{tpu_custom_call.1} parent=11 // pred_region
          _
        $region24: #{tpu_custom_call.1} parent=11 // pred_fallthru
          _
        // Predicated region
        $region25: #{tpu_custom_call.1} parent=11 // pred_check
          %p309 = pneg %p136
        $region26: #{tpu_custom_call.1} parent=11 // pred_check_branch
          %311 = sbr.rel (%p309) target = $region28
        $region27: #{tpu_custom_call.1} parent=11 // pred_region
          %313 = vsyncadd [#allocation9], 0
          %s315 = sshll.u32 %s4, 4
          %s316 = int_to_ptr.hbm [resolvable:$true] %s315
          %s317 = sshll.u32 [#allocation8], 4
          %s318 = int_to_ptr.vmem [resolvable:$true] %s317
          %320 = dma.hbm_to_vmem [thread:$0]  %s316, 128, %s318, [#allocation9]
        $region28: #{tpu_custom_call.1} parent=11 // pred_fallthru
          _
        // Predicated region
        $region29: #{tpu_custom_call.1} parent=11 // pred_check
          %p321 = pneg %p157
        $region30: #{tpu_custom_call.1} parent=11 // pred_check_branch
          %323 = sbr.rel (%p321) target = $region32
        $region31: #{tpu_custom_call.1} parent=11 // pred_region
          %325 = vsyncadd [#allocation9], 0
          %s327 = sshll.u32 %s5, 4
          %s328 = int_to_ptr.hbm [resolvable:$true] %s327
          %s329 = sshll.u32 [#allocation10], 4
          %s330 = int_to_ptr.vmem [resolvable:$true] %s329
          %332 = dma.hbm_to_vmem [thread:$0]  %s328, 128, %s330, [#allocation9]
        $region32: #{tpu_custom_call.1} parent=11 // pred_fallthru
          _
        // Predicated region
        $region33: #{tpu_custom_call.1} parent=11 // pred_check
          %p333 = pneg %p178
        $region34: #{tpu_custom_call.1} parent=11 // pred_check_branch
          %335 = sbr.rel (%p333) target = $region36
        $region35: #{tpu_custom_call.1} parent=11 // pred_region
          %337 = vsyncadd [#allocation12], 0
          %s338 = sshll.u32 %s6, 4
          %s339 = int_to_ptr.hbm [resolvable:$true] %s338
          %s340 = sshll.u32 [#allocation11], 4
          %s341 = int_to_ptr.vmem [resolvable:$true] %s340
          %346 = dma.hbm_to_vmem [thread:$0]  %s339, 1024, %s341, [#allocation12], 64, 64, 4
        $region36: #{tpu_custom_call.1} parent=11 // pred_fallthru
          _
        // Predicated region
        $region37: #{tpu_custom_call.1} parent=11 // pred_check
          %p347 = pneg %p199
        $region38: #{tpu_custom_call.1} parent=11 // pred_check_branch
          %349 = sbr.rel (%p347) target = $region40
        $region39: #{tpu_custom_call.1} parent=11 // pred_region
          _
        $region40: #{tpu_custom_call.1} parent=11 // pred_fallthru
          _
        // Predicated region
        $region41: #{tpu_custom_call.1} parent=11 // pred_check
          %p350 = pneg %p220
        $region42: #{tpu_custom_call.1} parent=11 // pred_check_branch
          %352 = sbr.rel (%p350) target = $region44
        $region43: #{tpu_custom_call.1} parent=11 // pred_region
          %354 = vsyncadd [#allocation12], 0
          %s355 = sshll.u32 %s8, 4
          %s356 = int_to_ptr.hbm [resolvable:$true] %s355
          %s357 = sshll.u32 [#allocation13], 4
          %s358 = int_to_ptr.vmem [resolvable:$true] %s357
          %363 = dma.hbm_to_vmem [thread:$0]  %s356, 8192, %s358, [#allocation12], 512, 512, 32
        $region44: #{tpu_custom_call.1} parent=11 // pred_fallthru
          _
        // Predicated region
        $region45: #{tpu_custom_call.1} parent=11 // pred_check
          %p364 = pneg %p241
        $region46: #{tpu_custom_call.1} parent=11 // pred_check_branch
          %366 = sbr.rel (%p364) target = $region48
        $region47: #{tpu_custom_call.1} parent=11 // pred_region
          %368 = vsyncadd [#allocation15], 0
          %s369 = sshll.u32 %s9, 4
          %s370 = int_to_ptr.hbm [resolvable:$true] %s369
          %s371 = sshll.u32 [#allocation14], 4
          %s372 = int_to_ptr.vmem [resolvable:$true] %s371
          %377 = dma.hbm_to_vmem [thread:$0]  %s370, 4096, %s372, [#allocation15], 64, 64, 4
        $region48: #{tpu_custom_call.1} parent=11 // pred_fallthru
          _
      $region12: #{tpu_custom_call.1} parent=5 // pred_fallthru
        _
      %p378 = scmp.lt.s32.totalorder %s26, 2
      // Predicated region
      $region49: #{tpu_custom_call.1} parent=5 // pred_check
        %p379 = pneg %p378
      $region50: #{tpu_custom_call.1} parent=5 // pred_check_branch
        %381 = sbr.rel (%p379) target = $region52
      $region51: #{tpu_custom_call.1} parent=5 // pred_region
        // Predicated region
        $region53: #{tpu_custom_call.1} parent=51 // pred_check
          %p382 = pneg %p46
        $region54: #{tpu_custom_call.1} parent=51 // pred_check_branch
          %384 = sbr.rel (%p382) target = $region56
        $region55: #{tpu_custom_call.1} parent=51 // pred_region
          %s385 = sand.u32 %s36, 1
          %s386 = scalar_lea.sflag [#allocation3], %s385
          %s387 = sand.u32 %s36, 1
          %s388 = smul.addr %s387, 8
          %s389 = scalar_lea.vmem [#allocation2], %s388
          %391 = vsyncadd %s386, 0
          %s392 = smul.addr %s26, 8
          %s393 = scalar_lea.hbm %s0, %s392
          %s395 = sshll.u32 %s393, 4
          %s396 = int_to_ptr.hbm [resolvable:$true] %s395
          %s397 = sshll.u32 %s389, 4
          %s398 = int_to_ptr.vmem [resolvable:$true] %s397
          %400 = dma.hbm_to_vmem [thread:$0]  %s396, 128, %s398, %s386
        $region56: #{tpu_custom_call.1} parent=51 // pred_fallthru
          _
      $region52: #{tpu_custom_call.1} parent=5 // pred_fallthru
        _
      %p401 = scmp.le.s32.totalorder 1, %s26
      %p402 = scmp.lt.s32.totalorder %s26, 3
      %p403 = pnand %p401, %p402
      %p404 = pneg %p403
      // Predicated region
      $region57: #{tpu_custom_call.1} parent=5 // pred_check
        _
      $region58: #{tpu_custom_call.1} parent=5 // pred_check_branch
        %406 = sbr.rel (%p403) target = $region60
      $region59: #{tpu_custom_call.1} parent=5 // pred_region
        %s407 = ssub.s32 %s26, 1
        %s408 = sand.u32 %s39, 1
        %s409 = scalar_lea.sflag [#allocation3], %s408
        %s410 = sand.u32 %s39, 1
        %s411 = smul.addr %s410, 8
        %s412 = scalar_lea.vmem [#allocation2], %s411
        // Predicated region
        $region61: #{tpu_custom_call.1} parent=59 // pred_check
          %p413 = pneg %p52
        $region62: #{tpu_custom_call.1} parent=59 // pred_check_branch
          %415 = sbr.rel (%p413) target = $region64
        $region63: #{tpu_custom_call.1} parent=59 // pred_region
          %417 = dma.done %s409, 128
        $region64: #{tpu_custom_call.1} parent=59 // pred_fallthru
          _
        // Predicated region
        $region65: #{tpu_custom_call.1} parent=59 // pred_check
          %p418 = pneg %p73
        $region66: #{tpu_custom_call.1} parent=59 // pred_check_branch
          %420 = sbr.rel (%p418) target = $region68
        $region67: #{tpu_custom_call.1} parent=59 // pred_region
          %422 = dma.done [#allocation6], 128
        $region68: #{tpu_custom_call.1} parent=59 // pred_fallthru
          _
        // Predicated region
        $region69: #{tpu_custom_call.1} parent=59 // pred_check
          %p423 = pneg %p94
        $region70: #{tpu_custom_call.1} parent=59 // pred_check_branch
          %425 = sbr.rel (%p423) target = $region72
        $region71: #{tpu_custom_call.1} parent=59 // pred_region
          %427 = dma.done [#allocation6], 128
        $region72: #{tpu_custom_call.1} parent=59 // pred_fallthru
          _
        // Predicated region
        $region73: #{tpu_custom_call.1} parent=59 // pred_check
          %p428 = pneg %p136
        $region74: #{tpu_custom_call.1} parent=59 // pred_check_branch
          %430 = sbr.rel (%p428) target = $region76
        $region75: #{tpu_custom_call.1} parent=59 // pred_region
          %432 = dma.done [#allocation9], 128
        $region76: #{tpu_custom_call.1} parent=59 // pred_fallthru
          _
        // Predicated region
        $region77: #{tpu_custom_call.1} parent=59 // pred_check
          %p433 = pneg %p157
        $region78: #{tpu_custom_call.1} parent=59 // pred_check_branch
          %435 = sbr.rel (%p433) target = $region80
        $region79: #{tpu_custom_call.1} parent=59 // pred_region
          %437 = dma.done [#allocation9], 128
        $region80: #{tpu_custom_call.1} parent=59 // pred_fallthru
          _
        // Predicated region
        $region81: #{tpu_custom_call.1} parent=59 // pred_check
          %p438 = pneg %p178
        $region82: #{tpu_custom_call.1} parent=59 // pred_check_branch
          %440 = sbr.rel (%p438) target = $region84
        $region83: #{tpu_custom_call.1} parent=59 // pred_region
          %442 = dma.done [#allocation12], 1024
        $region84: #{tpu_custom_call.1} parent=59 // pred_fallthru
          _
        // Predicated region
        $region85: #{tpu_custom_call.1} parent=59 // pred_check
          %p443 = pneg %p220
        $region86: #{tpu_custom_call.1} parent=59 // pred_check_branch
          %445 = sbr.rel (%p443) target = $region88
        $region87: #{tpu_custom_call.1} parent=59 // pred_region
          %447 = dma.done [#allocation12], 8192
        $region88: #{tpu_custom_call.1} parent=59 // pred_fallthru
          _
        // Predicated region
        $region89: #{tpu_custom_call.1} parent=59 // pred_check
          %p448 = pneg %p241
        $region90: #{tpu_custom_call.1} parent=59 // pred_check_branch
          %450 = sbr.rel (%p448) target = $region92
        $region91: #{tpu_custom_call.1} parent=59 // pred_region
          %452 = dma.done [#allocation15], 4096
        $region92: #{tpu_custom_call.1} parent=59 // pred_fallthru
          _
        %s453 = sand.u32 %s39, 1
        %s454 = scalar_lea.sflag [#allocation3], %s453
        %s455 = sand.u32 %s39, 1
        %s456 = smul.addr %s455, 8
        %s457 = scalar_lea.vmem [#allocation2], %s456
        %p458 = pneg %p52
        %p459 = pneg %p49
        %p460 = pneg %p73
        %p461 = pneg %p70
        %p462 = pneg %p94
        %p463 = pneg %p91
        %p464 = pneg %p115
        %p465 = pneg %p112
        %p466 = pneg %p136
        %p467 = pneg %p133
        %p468 = pneg %p157
        %p469 = pneg %p154
        %p470 = pneg %p178
        %p471 = pneg %p175
        %p472 = pneg %p199
        %p473 = pneg %p196
        %p474 = pneg %p220
        %p475 = pneg %p217
        %p476 = pneg %p241
        %p477 = pneg %p238
        %p478 = pneg %p267
        %p479 = pneg %p264
        %s480 = sand.u32 %s254, 1
        %s481 = scalar_lea.sflag [#allocation4], %s480
        %s482 = sand.u32 %s254, 1
        %s483 = smul.addr %s482, 8
        %s484 = scalar_lea.vmem [#allocation16], %s483
        %v485 = vld [vmem:[%s412] sm:$0xff]
        %v486 = vld [vmem:[%s3] sm:$0x1]
        %v487 = vmul.f32 %v485, %v485
        %488 = vadd.xlane.f32.xlu0 %v487
        %v489 = vpop.xlane.xlu0 %488
        %v490 = vrcp.pop 128.0
        %v491 = vmul.f32 128.0, %v490
        %v492 = vsub.f32 1.0, %v491
        %v493 = vmul.f32 %v490, %v492
        %v494 = vadd.f32 %v490, %v493
        %vm495 = vweird.f32 %v490
        %v496 = vsel %vm495, %v490, %v494
        %v497 = vmul.f32 %v489, %v496
        %v498 = vadd.f32 %v497, 1e-05
        %v499 = vrsqrt.pop %v498
        %v500 = vmul.f32 %v499, %v498
        %v501 = vmul.f32 %v500, %v499
        %v502 = vmul.f32 0.5, %v501
        %v503 = vsub.f32 1.5, %v502
        %v504 = vmul.f32 %v499, %v503
        %vm505 = vweird.f32 %v498
        %vm506 = vweird.f32 %v499
        %vm507 = vmor %vm505, %vm506
        %v508 = vsel %vm507, %v499, %v504
        %v509 = vmul.f32 %v485, %v508
        %v511 = vperm.slane %v486, 0
        %v513 = vmul.f32 %v509, %v511
        %v514 = vlaneseq
        %v515 = vand.u32 %v514, 127
        %v516 = vand.u32 %v515, 1
        %vm517 = vcmp.eq.s32.totalorder %v516, 0
        %518 = vrot.lane.b32.xlu0 %v513, 127
        %v519 = vpop.permute.xlu0 %518
        %520 = vrot.lane.b32.xlu0 %v513, 1
        %v521 = vpop.permute.xlu0 %520
        %v522 = vsel %vm517, %v519, %v521
        %v523 = vld [vmem:[#allocation5] sm:$0xff]
        %v524 = vmul.f32 %v513, %v523
        %v525 = vld [vmem:[#allocation7] sm:$0xff]
        %v526 = vmul.f32 %v522, %v525
        %v527 = vadd.f32 %v524, %v526
        %v528 = vld [vmem:[#allocation8] sm:$0xff]
        %v529 = vperm.slane %v528, 0
        %v530 = vlaneseq
        %v531 = vshrl.u32 %v530, 7
        %533 = vset.pattern.permute.xlu0 %v531
        %534 = vperm.xlu0 %533, %v529
        %v535 = vpop.permute.xlu0 %534
        %v536 = vperm.slane %v528, 1
        %v537 = vlaneseq
        %v538 = vshrl.u32 %v537, 7
        %540 = vset.pattern.permute.xlu0 %v538
        %541 = vperm.xlu0 %540, %v536
        %v542 = vpop.permute.xlu0 %541
        %v543 = vperm.slane %v528, 2
        %v544 = vlaneseq
        %v545 = vshrl.u32 %v544, 7
        %547 = vset.pattern.permute.xlu0 %v545
        %548 = vperm.xlu0 %547, %v543
        %v549 = vpop.permute.xlu0 %548
        %v550 = vperm.slane %v528, 3
        %v551 = vlaneseq
        %v552 = vshrl.u32 %v551, 7
        %554 = vset.pattern.permute.xlu0 %v552
        %555 = vperm.xlu0 %554, %v550
        %v556 = vpop.permute.xlu0 %555
        %v557 = vperm.slane %v528, 4
        %v558 = vlaneseq
        %v559 = vshrl.u32 %v558, 7
        %561 = vset.pattern.permute.xlu0 %v559
        %562 = vperm.xlu0 %561, %v557
        %v563 = vpop.permute.xlu0 %562
        %v564 = vperm.slane %v528, 5
        %v565 = vlaneseq
        %v566 = vshrl.u32 %v565, 7
        %568 = vset.pattern.permute.xlu0 %v566
        %569 = vperm.xlu0 %568, %v564
        %v570 = vpop.permute.xlu0 %569
        %v571 = vperm.slane %v528, 6
        %v572 = vlaneseq
        %v573 = vshrl.u32 %v572, 7
        %575 = vset.pattern.permute.xlu0 %v573
        %576 = vperm.xlu0 %575, %v571
        %v577 = vpop.permute.xlu0 %576
        %v578 = vperm.slane %v528, 7
        %v579 = vlaneseq
        %v580 = vshrl.u32 %v579, 7
        %582 = vset.pattern.permute.xlu0 %v580
        %583 = vperm.xlu0 %582, %v578
        %v584 = vpop.permute.xlu0 %583
        %v585 = vld [vmem:[#allocation10] sm:$0xff]
        %v586 = vperm.slane %v585, 0
        %v587 = vlaneseq
        %v588 = vshrl.u32 %v587, 7
        %590 = vset.pattern.permute.xlu0 %v588
        %591 = vperm.xlu0 %590, %v586
        %v592 = vpop.permute.xlu0 %591
        %v593 = vperm.slane %v585, 1
        %v594 = vlaneseq
        %v595 = vshrl.u32 %v594, 7
        %597 = vset.pattern.permute.xlu0 %v595
        %598 = vperm.xlu0 %597, %v593
        %v599 = vpop.permute.xlu0 %598
        %v600 = vperm.slane %v585, 2
        %v601 = vlaneseq
        %v602 = vshrl.u32 %v601, 7
        %604 = vset.pattern.permute.xlu0 %v602
        %605 = vperm.xlu0 %604, %v600
        %v606 = vpop.permute.xlu0 %605
        %v607 = vperm.slane %v585, 3
        %v608 = vlaneseq
        %v609 = vshrl.u32 %v608, 7
        %611 = vset.pattern.permute.xlu0 %v609
        %612 = vperm.xlu0 %611, %v607
        %v613 = vpop.permute.xlu0 %612
        %v614 = vperm.slane %v585, 4
        %v615 = vlaneseq
        %v616 = vshrl.u32 %v615, 7
        %618 = vset.pattern.permute.xlu0 %v616
        %619 = vperm.xlu0 %618, %v614
        %v620 = vpop.permute.xlu0 %619
        %v621 = vperm.slane %v585, 5
        %v622 = vlaneseq
        %v623 = vshrl.u32 %v622, 7
        %625 = vset.pattern.permute.xlu0 %v623
        %626 = vperm.xlu0 %625, %v621
        %v627 = vpop.permute.xlu0 %626
        %v628 = vperm.slane %v585, 6
        %v629 = vlaneseq
        %v630 = vshrl.u32 %v629, 7
        %632 = vset.pattern.permute.xlu0 %v630
        %633 = vperm.xlu0 %632, %v628
        %v634 = vpop.permute.xlu0 %633
        %v635 = vperm.slane %v585, 7
        %v636 = vlaneseq
        %v637 = vshrl.u32 %v636, 7
        %639 = vset.pattern.permute.xlu0 %v637
        %640 = vperm.xlu0 %639, %v635
        %v641 = vpop.permute.xlu0 %640
        %v643 = vrot.slane %v527, 1
        %v644 = vrot.slane %v527, 2
        %v645 = vrot.slane %v527, 3
        %v646 = vrot.slane %v527, 4
        %v647 = vrot.slane %v527, 5
        %v648 = vrot.slane %v527, 6
        %v649 = vrot.slane %v527, 7
        %v650 = vperm.slane %v527, 0
        %v651 = vperm.slane %v643, 0
        %v652 = vperm.slane %v644, 0
        %v653 = vperm.slane %v645, 0
        %v654 = vperm.slane %v646, 0
        %v655 = vperm.slane %v647, 0
        %v656 = vperm.slane %v648, 0
        %v657 = vperm.slane %v649, 0
        %v666 = vmul.f32 %v650, %v535
        %v667 = vmul.f32 %v651, %v542
        %v668 = vmul.f32 %v652, %v549
        %v669 = vmul.f32 %v653, %v556
        %v670 = vmul.f32 %v654, %v563
        %v671 = vmul.f32 %v655, %v570
        %v672 = vmul.f32 %v656, %v577
        %v673 = vmul.f32 %v657, %v584
        %v674 = vsub.f32 0.0, %v666
        %v675 = vsub.f32 0.0, %v667
        %v676 = vsub.f32 0.0, %v668
        %v677 = vsub.f32 0.0, %v669
        %v678 = vsub.f32 0.0, %v670
        %v679 = vsub.f32 0.0, %v671
        %v680 = vsub.f32 0.0, %v672
        %v681 = vsub.f32 0.0, %v673
        %v682 = vmul.f32 %v674, 1.442695
        %v683 = vpow.pop %v682
        %v684 = vmul.f32 %v675, 1.442695
        %v685 = vpow.pop %v684
        %v686 = vmul.f32 %v676, 1.442695
        %v687 = vpow.pop %v686
        %v688 = vmul.f32 %v677, 1.442695
        %v689 = vpow.pop %v688
        %v690 = vmul.f32 %v678, 1.442695
        %v691 = vpow.pop %v690
        %v692 = vmul.f32 %v679, 1.442695
        %v693 = vpow.pop %v692
        %v694 = vmul.f32 %v680, 1.442695
        %v695 = vpow.pop %v694
        %v696 = vmul.f32 %v681, 1.442695
        %v697 = vpow.pop %v696
        %v698 = vadd.f32 %v683, 1.0
        %v699 = vadd.f32 %v685, 1.0
        %v700 = vadd.f32 %v687, 1.0
        %v701 = vadd.f32 %v689, 1.0
        %v702 = vadd.f32 %v691, 1.0
        %v703 = vadd.f32 %v693, 1.0
        %v704 = vadd.f32 %v695, 1.0
        %v705 = vadd.f32 %v697, 1.0
        %v706 = vrcp.pop %v698
        %v707 = vmul.f32 %v698, %v706
        %v708 = vsub.f32 1.0, %v707
        %v709 = vmul.f32 %v706, %v708
        %v710 = vadd.f32 %v706, %v709
        %vm711 = vweird.f32 %v698
        %vm712 = vweird.f32 %v706
        %vm713 = vmor %vm711, %vm712
        %v714 = vsel %vm713, %v706, %v710
        %v715 = vand.u32 2147483647, %v698
        %vm716 = vcmp.eq.f32.partialorder %v715, 8.507059e+37
        %v717 = vand.u32 %v698, 2147483648
        %v718 = vor.u32 1.1754944e-38, %v717
        %v719 = vsel %vm716, %v718, %v714
        %v720 = vmul.f32 1.0, %v719
        %v721 = vrcp.pop %v699
        %v722 = vmul.f32 %v699, %v721
        %v723 = vsub.f32 1.0, %v722
        %v724 = vmul.f32 %v721, %v723
        %v725 = vadd.f32 %v721, %v724
        %vm726 = vweird.f32 %v699
        %vm727 = vweird.f32 %v721
        %vm728 = vmor %vm726, %vm727
        %v729 = vsel %vm728, %v721, %v725
        %v730 = vand.u32 2147483647, %v699
        %vm731 = vcmp.eq.f32.partialorder %v730, 8.507059e+37
        %v732 = vand.u32 %v699, 2147483648
        %v733 = vor.u32 1.1754944e-38, %v732
        %v734 = vsel %vm731, %v733, %v729
        %v735 = vmul.f32 1.0, %v734
        %v736 = vrcp.pop %v700
        %v737 = vmul.f32 %v700, %v736
        %v738 = vsub.f32 1.0, %v737
        %v739 = vmul.f32 %v736, %v738
        %v740 = vadd.f32 %v736, %v739
        %vm741 = vweird.f32 %v700
        %vm742 = vweird.f32 %v736
        %vm743 = vmor %vm741, %vm742
        %v744 = vsel %vm743, %v736, %v740
        %v745 = vand.u32 2147483647, %v700
        %vm746 = vcmp.eq.f32.partialorder %v745, 8.507059e+37
        %v747 = vand.u32 %v700, 2147483648
        %v748 = vor.u32 1.1754944e-38, %v747
        %v749 = vsel %vm746, %v748, %v744
        %v750 = vmul.f32 1.0, %v749
        %v751 = vrcp.pop %v701
        %v752 = vmul.f32 %v701, %v751
        %v753 = vsub.f32 1.0, %v752
        %v754 = vmul.f32 %v751, %v753
        %v755 = vadd.f32 %v751, %v754
        %vm756 = vweird.f32 %v701
        %vm757 = vweird.f32 %v751
        %vm758 = vmor %vm756, %vm757
        %v759 = vsel %vm758, %v751, %v755
        %v760 = vand.u32 2147483647, %v701
        %vm761 = vcmp.eq.f32.partialorder %v760, 8.507059e+37
        %v762 = vand.u32 %v701, 2147483648
        %v763 = vor.u32 1.1754944e-38, %v762
        %v764 = vsel %vm761, %v763, %v759
        %v765 = vmul.f32 1.0, %v764
        %v766 = vrcp.pop %v702
        %v767 = vmul.f32 %v702, %v766
        %v768 = vsub.f32 1.0, %v767
        %v769 = vmul.f32 %v766, %v768
        %v770 = vadd.f32 %v766, %v769
        %vm771 = vweird.f32 %v702
        %vm772 = vweird.f32 %v766
        %vm773 = vmor %vm771, %vm772
        %v774 = vsel %vm773, %v766, %v770
        %v775 = vand.u32 2147483647, %v702
        %vm776 = vcmp.eq.f32.partialorder %v775, 8.507059e+37
        %v777 = vand.u32 %v702, 2147483648
        %v778 = vor.u32 1.1754944e-38, %v777
        %v779 = vsel %vm776, %v778, %v774
        %v780 = vmul.f32 1.0, %v779
        %v781 = vrcp.pop %v703
        %v782 = vmul.f32 %v703, %v781
        %v783 = vsub.f32 1.0, %v782
        %v784 = vmul.f32 %v781, %v783
        %v785 = vadd.f32 %v781, %v784
        %vm786 = vweird.f32 %v703
        %vm787 = vweird.f32 %v781
        %vm788 = vmor %vm786, %vm787
        %v789 = vsel %vm788, %v781, %v785
        %v790 = vand.u32 2147483647, %v703
        %vm791 = vcmp.eq.f32.partialorder %v790, 8.507059e+37
        %v792 = vand.u32 %v703, 2147483648
        %v793 = vor.u32 1.1754944e-38, %v792
        %v794 = vsel %vm791, %v793, %v789
        %v795 = vmul.f32 1.0, %v794
        %v796 = vrcp.pop %v704
        %v797 = vmul.f32 %v704, %v796
        %v798 = vsub.f32 1.0, %v797
        %v799 = vmul.f32 %v796, %v798
        %v800 = vadd.f32 %v796, %v799
        %vm801 = vweird.f32 %v704
        %vm802 = vweird.f32 %v796
        %vm803 = vmor %vm801, %vm802
        %v804 = vsel %vm803, %v796, %v800
        %v805 = vand.u32 2147483647, %v704
        %vm806 = vcmp.eq.f32.partialorder %v805, 8.507059e+37
        %v807 = vand.u32 %v704, 2147483648
        %v808 = vor.u32 1.1754944e-38, %v807
        %v809 = vsel %vm806, %v808, %v804
        %v810 = vmul.f32 1.0, %v809
        %v811 = vrcp.pop %v705
        %v812 = vmul.f32 %v705, %v811
        %v813 = vsub.f32 1.0, %v812
        %v814 = vmul.f32 %v811, %v813
        %v815 = vadd.f32 %v811, %v814
        %vm816 = vweird.f32 %v705
        %vm817 = vweird.f32 %v811
        %vm818 = vmor %vm816, %vm817
        %v819 = vsel %vm818, %v811, %v815
        %v820 = vand.u32 2147483647, %v705
        %vm821 = vcmp.eq.f32.partialorder %v820, 8.507059e+37
        %v822 = vand.u32 %v705, 2147483648
        %v823 = vor.u32 1.1754944e-38, %v822
        %v824 = vsel %vm821, %v823, %v819
        %v825 = vmul.f32 1.0, %v824
        %v826 = vmul.f32 %v666, %v720
        %v827 = vmul.f32 %v667, %v735
        %v828 = vmul.f32 %v668, %v750
        %v829 = vmul.f32 %v669, %v765
        %v830 = vmul.f32 %v670, %v780
        %v831 = vmul.f32 %v671, %v795
        %v832 = vmul.f32 %v672, %v810
        %v833 = vmul.f32 %v673, %v825
        %v834 = vmul.f32 %v826, %v592
        %v835 = vmul.f32 %v827, %v599
        %v836 = vmul.f32 %v828, %v606
        %v837 = vmul.f32 %v829, %v613
        %v838 = vmul.f32 %v830, %v620
        %v839 = vmul.f32 %v831, %v627
        %v840 = vmul.f32 %v832, %v634
        %v841 = vmul.f32 %v833, %v641
        %v842 = vrot.slane %v834, 4
        %v843 = vadd.f32 %v834, %v842
        %v844 = vrot.slane %v843, 2
        %v845 = vadd.f32 %v843, %v844
        %v846 = vrot.slane %v845, 1
        %v847 = vadd.f32 %v845, %v846
        %v848 = vrot.slane %v835, 4
        %v849 = vadd.f32 %v835, %v848
        %v850 = vrot.slane %v849, 2
        %v851 = vadd.f32 %v849, %v850
        %v852 = vrot.slane %v851, 1
        %v853 = vadd.f32 %v851, %v852
        %v854 = vrot.slane %v836, 4
        %v855 = vadd.f32 %v836, %v854
        %v856 = vrot.slane %v855, 2
        %v857 = vadd.f32 %v855, %v856
        %v858 = vrot.slane %v857, 1
        %v859 = vadd.f32 %v857, %v858
        %v860 = vrot.slane %v837, 4
        %v861 = vadd.f32 %v837, %v860
        %v862 = vrot.slane %v861, 2
        %v863 = vadd.f32 %v861, %v862
        %v864 = vrot.slane %v863, 1
        %v865 = vadd.f32 %v863, %v864
        %v866 = vrot.slane %v838, 4
        %v867 = vadd.f32 %v838, %v866
        %v868 = vrot.slane %v867, 2
        %v869 = vadd.f32 %v867, %v868
        %v870 = vrot.slane %v869, 1
        %v871 = vadd.f32 %v869, %v870
        %v872 = vrot.slane %v839, 4
        %v873 = vadd.f32 %v839, %v872
        %v874 = vrot.slane %v873, 2
        %v875 = vadd.f32 %v873, %v874
        %v876 = vrot.slane %v875, 1
        %v877 = vadd.f32 %v875, %v876
        %v878 = vrot.slane %v840, 4
        %v879 = vadd.f32 %v840, %v878
        %v880 = vrot.slane %v879, 2
        %v881 = vadd.f32 %v879, %v880
        %v882 = vrot.slane %v881, 1
        %v883 = vadd.f32 %v881, %v882
        %v884 = vrot.slane %v841, 4
        %v885 = vadd.f32 %v841, %v884
        %v886 = vrot.slane %v885, 2
        %v887 = vadd.f32 %v885, %v886
        %v888 = vrot.slane %v887, 1
        %v889 = vadd.f32 %v887, %v888
        %vm898 = vcmask 1041409
        %v899 = vsel %vm898, %v853, %v847
        %vm900 = vcmask 1042434
        %v901 = vsel %vm900, %v859, %v899
        %vm902 = vcmask 1043459
        %v903 = vsel %vm902, %v865, %v901
        %vm904 = vcmask 1044484
        %v905 = vsel %vm904, %v871, %v903
        %vm906 = vcmask 1045509
        %v907 = vsel %vm906, %v877, %v905
        %vm908 = vcmask 1046534
        %v909 = vsel %vm908, %v883, %v907
        %vm910 = vcmask 1047559
        %v911 = vsel %vm910, %v889, %v909
        %v913 = vmul.f32 %v527, %v911
        %v914 = vpack.c.bf16 %v913, %v913
        %v915 = vld [vmem:[#allocation11] sm:$0xf]
        %v916 = vld [vmem:[#allocation11 + $0x4] sm:$0xf]
        %v917 = vld [vmem:[#allocation11 + $0x8] sm:$0xf]
        %v918 = vld [vmem:[#allocation11 + $0xc] sm:$0xf]
        %v919 = vld [vmem:[#allocation11 + $0x10] sm:$0xf]
        %v920 = vld [vmem:[#allocation11 + $0x14] sm:$0xf]
        %v921 = vld [vmem:[#allocation11 + $0x18] sm:$0xf]
        %v922 = vld [vmem:[#allocation11 + $0x1c] sm:$0xf]
        %v923 = vld [vmem:[#allocation11 + $0x20] sm:$0xf]
        %v924 = vld [vmem:[#allocation11 + $0x24] sm:$0xf]
        %v925 = vld [vmem:[#allocation11 + $0x28] sm:$0xf]
        %v926 = vld [vmem:[#allocation11 + $0x2c] sm:$0xf]
        %v927 = vld [vmem:[#allocation11 + $0x30] sm:$0xf]
        %v928 = vld [vmem:[#allocation11 + $0x34] sm:$0xf]
        %v929 = vld [vmem:[#allocation11 + $0x38] sm:$0xf]
        %v930 = vld [vmem:[#allocation11 + $0x3c] sm:$0xf]
        %v947 = vunpack.c.l.b16 %v915
        %v948 = vunpack.c.l.b16 %v916
        %v949 = vunpack.c.l.b16 %v917
        %v950 = vunpack.c.l.b16 %v918
        %v951 = vunpack.c.l.b16 %v919
        %v952 = vunpack.c.l.b16 %v920
        %v953 = vunpack.c.l.b16 %v921
        %v954 = vunpack.c.l.b16 %v922
        %v955 = vunpack.c.l.b16 %v923
        %v956 = vunpack.c.l.b16 %v924
        %v957 = vunpack.c.l.b16 %v925
        %v958 = vunpack.c.l.b16 %v926
        %v959 = vunpack.c.l.b16 %v927
        %v960 = vunpack.c.l.b16 %v928
        %v961 = vunpack.c.l.b16 %v929
        %v962 = vunpack.c.l.b16 %v930
        %v963 = vpack.c.b16 %v948, %v947
        %v964 = vpack.c.b16 %v950, %v949
        %v965 = vpack.c.b16 %v952, %v951
        %v966 = vpack.c.b16 %v954, %v953
        %v967 = vpack.c.b16 %v956, %v955
        %v968 = vpack.c.b16 %v958, %v957
        %v969 = vpack.c.b16 %v960, %v959
        %v970 = vpack.c.b16 %v962, %v961
        %979 = vmatpush.bf16.msra.mxu0 %v970
        %980 = vmatpush.bf16.msra.mxu0 %v969
        %981 = vmatpush.bf16.msra.mxu0 %v968
        %982 = vmatpush.bf16.msra.mxu0 %v967
        %983 = vmatpush.bf16.msra.mxu0 %v966
        %984 = vmatpush.bf16.msra.mxu0 %v965
        %985 = vmatpush.bf16.msra.mxu0 %v964
        %986 = vmatpush.bf16.msra.mxu0 %v963
        %987 = vmatmul.bf16.gmra.mxu0 %v914
        %v988 = vpop.f32.mrf.mxu0
        %v989 = vadd.f32 0.0, %v988
        %v990 = vpop.f32.mrf.mxu0
        %991 = vdwg.mxu0
        %v992 = vadd.f32 %v485, %v989
        %v993 = vld [vmem:[%s7] sm:$0x1]
        %v994 = vmul.f32 %v992, %v992
        %995 = vadd.xlane.f32.xlu0 %v994
        %v996 = vpop.xlane.xlu0 %995
        %v997 = vmul.f32 %v996, %v496
        %v998 = vadd.f32 %v997, 1e-05
        %v999 = vrsqrt.pop %v998
        %v1000 = vmul.f32 %v999, %v998
        %v1001 = vmul.f32 %v1000, %v999
        %v1002 = vmul.f32 0.5, %v1001
        %v1003 = vsub.f32 1.5, %v1002
        %v1004 = vmul.f32 %v999, %v1003
        %vm1005 = vweird.f32 %v998
        %vm1006 = vweird.f32 %v999
        %vm1007 = vmor %vm1005, %vm1006
        %v1008 = vsel %vm1007, %v999, %v1004
        %v1009 = vmul.f32 %v992, %v1008
        %v1011 = vperm.slane %v993, 0
        %v1013 = vmul.f32 %v1009, %v1011
        %v1014 = vpack.c.bf16 %v1013, %v1013
        %v1015 = vld [vmem:[#allocation13] sm:$0xff]
        %v1016 = vld [vmem:[#allocation13 + $0x8] sm:$0xff]
        %v1017 = vld [vmem:[#allocation13 + $0x10] sm:$0xff]
        %v1018 = vld [vmem:[#allocation13 + $0x18] sm:$0xff]
        %v1019 = vld [vmem:[#allocation13 + $0x20] sm:$0xff]
        %v1020 = vld [vmem:[#allocation13 + $0x28] sm:$0xff]
        %v1021 = vld [vmem:[#allocation13 + $0x30] sm:$0xff]
        %v1022 = vld [vmem:[#allocation13 + $0x38] sm:$0xff]
        %v1023 = vld [vmem:[#allocation13 + $0x40] sm:$0xff]
        %v1024 = vld [vmem:[#allocation13 + $0x48] sm:$0xff]
        %v1025 = vld [vmem:[#allocation13 + $0x50] sm:$0xff]
        %v1026 = vld [vmem:[#allocation13 + $0x58] sm:$0xff]
        %v1027 = vld [vmem:[#allocation13 + $0x60] sm:$0xff]
        %v1028 = vld [vmem:[#allocation13 + $0x68] sm:$0xff]
        %v1029 = vld [vmem:[#allocation13 + $0x70] sm:$0xff]
        %v1030 = vld [vmem:[#allocation13 + $0x78] sm:$0xff]
        %v1031 = vld [vmem:[#allocation13 + $0x80] sm:$0xff]
        %v1032 = vld [vmem:[#allocation13 + $0x88] sm:$0xff]
        %v1033 = vld [vmem:[#allocation13 + $0x90] sm:$0xff]
        %v1034 = vld [vmem:[#allocation13 + $0x98] sm:$0xff]
        %v1035 = vld [vmem:[#allocation13 + $0xa0] sm:$0xff]
        %v1036 = vld [vmem:[#allocation13 + $0xa8] sm:$0xff]
        %v1037 = vld [vmem:[#allocation13 + $0xb0] sm:$0xff]
        %v1038 = vld [vmem:[#allocation13 + $0xb8] sm:$0xff]
        %v1039 = vld [vmem:[#allocation13 + $0xc0] sm:$0xff]
        %v1040 = vld [vmem:[#allocation13 + $0xc8] sm:$0xff]
        %v1041 = vld [vmem:[#allocation13 + $0xd0] sm:$0xff]
        %v1042 = vld [vmem:[#allocation13 + $0xd8] sm:$0xff]
        %v1043 = vld [vmem:[#allocation13 + $0xe0] sm:$0xff]
        %v1044 = vld [vmem:[#allocation13 + $0xe8] sm:$0xff]
        %v1045 = vld [vmem:[#allocation13 + $0xf0] sm:$0xff]
        %v1046 = vld [vmem:[#allocation13 + $0xf8] sm:$0xff]
        %v1047 = vld [vmem:[#allocation13 + $0x100] sm:$0xff]
        %v1048 = vld [vmem:[#allocation13 + $0x108] sm:$0xff]
        %v1049 = vld [vmem:[#allocation13 + $0x110] sm:$0xff]
        %v1050 = vld [vmem:[#allocation13 + $0x118] sm:$0xff]
        %v1051 = vld [vmem:[#allocation13 + $0x120] sm:$0xff]
        %v1052 = vld [vmem:[#allocation13 + $0x128] sm:$0xff]
        %v1053 = vld [vmem:[#allocation13 + $0x130] sm:$0xff]
        %v1054 = vld [vmem:[#allocation13 + $0x138] sm:$0xff]
        %v1055 = vld [vmem:[#allocation13 + $0x140] sm:$0xff]
        %v1056 = vld [vmem:[#allocation13 + $0x148] sm:$0xff]
        %v1057 = vld [vmem:[#allocation13 + $0x150] sm:$0xff]
        %v1058 = vld [vmem:[#allocation13 + $0x158] sm:$0xff]
        %v1059 = vld [vmem:[#allocation13 + $0x160] sm:$0xff]
        %v1060 = vld [vmem:[#allocation13 + $0x168] sm:$0xff]
        %v1061 = vld [vmem:[#allocation13 + $0x170] sm:$0xff]
        %v1062 = vld [vmem:[#allocation13 + $0x178] sm:$0xff]
        %v1063 = vld [vmem:[#allocation13 + $0x180] sm:$0xff]
        %v1064 = vld [vmem:[#allocation13 + $0x188] sm:$0xff]
        %v1065 = vld [vmem:[#allocation13 + $0x190] sm:$0xff]
        %v1066 = vld [vmem:[#allocation13 + $0x198] sm:$0xff]
        %v1067 = vld [vmem:[#allocation13 + $0x1a0] sm:$0xff]
        %v1068 = vld [vmem:[#allocation13 + $0x1a8] sm:$0xff]
        %v1069 = vld [vmem:[#allocation13 + $0x1b0] sm:$0xff]
        %v1070 = vld [vmem:[#allocation13 + $0x1b8] sm:$0xff]
        %v1071 = vld [vmem:[#allocation13 + $0x1c0] sm:$0xff]
        %v1072 = vld [vmem:[#allocation13 + $0x1c8] sm:$0xff]
        %v1073 = vld [vmem:[#allocation13 + $0x1d0] sm:$0xff]
        %v1074 = vld [vmem:[#allocation13 + $0x1d8] sm:$0xff]
        %v1075 = vld [vmem:[#allocation13 + $0x1e0] sm:$0xff]
        %v1076 = vld [vmem:[#allocation13 + $0x1e8] sm:$0xff]
        %v1077 = vld [vmem:[#allocation13 + $0x1f0] sm:$0xff]
        %v1078 = vld [vmem:[#allocation13 + $0x1f8] sm:$0xff]
        %v1143 = vunpack.c.l.b16 %v1015
        %v1144 = vunpack.c.h.b16 %v1015
        %v1145 = vunpack.c.l.b16 %v1016
        %v1146 = vunpack.c.h.b16 %v1016
        %v1147 = vunpack.c.l.b16 %v1017
        %v1148 = vunpack.c.h.b16 %v1017
        %v1149 = vunpack.c.l.b16 %v1018
        %v1150 = vunpack.c.h.b16 %v1018
        %v1151 = vunpack.c.l.b16 %v1019
        %v1152 = vunpack.c.h.b16 %v1019
        %v1153 = vunpack.c.l.b16 %v1020
        %v1154 = vunpack.c.h.b16 %v1020
        %v1155 = vunpack.c.l.b16 %v1021
        %v1156 = vunpack.c.h.b16 %v1021
        %v1157 = vunpack.c.l.b16 %v1022
        %v1158 = vunpack.c.h.b16 %v1022
        %v1159 = vunpack.c.l.b16 %v1023
        %v1160 = vunpack.c.h.b16 %v1023
        %v1161 = vunpack.c.l.b16 %v1024
        %v1162 = vunpack.c.h.b16 %v1024
        %v1163 = vunpack.c.l.b16 %v1025
        %v1164 = vunpack.c.h.b16 %v1025
        %v1165 = vunpack.c.l.b16 %v1026
        %v1166 = vunpack.c.h.b16 %v1026
        %v1167 = vunpack.c.l.b16 %v1027
        %v1168 = vunpack.c.h.b16 %v1027
        %v1169 = vunpack.c.l.b16 %v1028
        %v1170 = vunpack.c.h.b16 %v1028
        %v1171 = vunpack.c.l.b16 %v1029
        %v1172 = vunpack.c.h.b16 %v1029
        %v1173 = vunpack.c.l.b16 %v1030
        %v1174 = vunpack.c.h.b16 %v1030
        %v1175 = vunpack.c.l.b16 %v1031
        %v1176 = vunpack.c.h.b16 %v1031
        %v1177 = vunpack.c.l.b16 %v1032
        %v1178 = vunpack.c.h.b16 %v1032
        %v1179 = vunpack.c.l.b16 %v1033
        %v1180 = vunpack.c.h.b16 %v1033
        %v1181 = vunpack.c.l.b16 %v1034
        %v1182 = vunpack.c.h.b16 %v1034
        %v1183 = vunpack.c.l.b16 %v1035
        %v1184 = vunpack.c.h.b16 %v1035
        %v1185 = vunpack.c.l.b16 %v1036
        %v1186 = vunpack.c.h.b16 %v1036
        %v1187 = vunpack.c.l.b16 %v1037
        %v1188 = vunpack.c.h.b16 %v1037
        %v1189 = vunpack.c.l.b16 %v1038
        %v1190 = vunpack.c.h.b16 %v1038
        %v1191 = vunpack.c.l.b16 %v1039
        %v1192 = vunpack.c.h.b16 %v1039
        %v1193 = vunpack.c.l.b16 %v1040
        %v1194 = vunpack.c.h.b16 %v1040
        %v1195 = vunpack.c.l.b16 %v1041
        %v1196 = vunpack.c.h.b16 %v1041
        %v1197 = vunpack.c.l.b16 %v1042
        %v1198 = vunpack.c.h.b16 %v1042
        %v1199 = vunpack.c.l.b16 %v1043
        %v1200 = vunpack.c.h.b16 %v1043
        %v1201 = vunpack.c.l.b16 %v1044
        %v1202 = vunpack.c.h.b16 %v1044
        %v1203 = vunpack.c.l.b16 %v1045
        %v1204 = vunpack.c.h.b16 %v1045
        %v1205 = vunpack.c.l.b16 %v1046
        %v1206 = vunpack.c.h.b16 %v1046
        %v1207 = vunpack.c.l.b16 %v1047
        %v1208 = vunpack.c.h.b16 %v1047
        %v1209 = vunpack.c.l.b16 %v1048
        %v1210 = vunpack.c.h.b16 %v1048
        %v1211 = vunpack.c.l.b16 %v1049
        %v1212 = vunpack.c.h.b16 %v1049
        %v1213 = vunpack.c.l.b16 %v1050
        %v1214 = vunpack.c.h.b16 %v1050
        %v1215 = vunpack.c.l.b16 %v1051
        %v1216 = vunpack.c.h.b16 %v1051
        %v1217 = vunpack.c.l.b16 %v1052
        %v1218 = vunpack.c.h.b16 %v1052
        %v1219 = vunpack.c.l.b16 %v1053
        %v1220 = vunpack.c.h.b16 %v1053
        %v1221 = vunpack.c.l.b16 %v1054
        %v1222 = vunpack.c.h.b16 %v1054
        %v1223 = vunpack.c.l.b16 %v1055
        %v1224 = vunpack.c.h.b16 %v1055
        %v1225 = vunpack.c.l.b16 %v1056
        %v1226 = vunpack.c.h.b16 %v1056
        %v1227 = vunpack.c.l.b16 %v1057
        %v1228 = vunpack.c.h.b16 %v1057
        %v1229 = vunpack.c.l.b16 %v1058
        %v1230 = vunpack.c.h.b16 %v1058
        %v1231 = vunpack.c.l.b16 %v1059
        %v1232 = vunpack.c.h.b16 %v1059
        %v1233 = vunpack.c.l.b16 %v1060
        %v1234 = vunpack.c.h.b16 %v1060
        %v1235 = vunpack.c.l.b16 %v1061
        %v1236 = vunpack.c.h.b16 %v1061
        %v1237 = vunpack.c.l.b16 %v1062
        %v1238 = vunpack.c.h.b16 %v1062
        %v1239 = vunpack.c.l.b16 %v1063
        %v1240 = vunpack.c.h.b16 %v1063
        %v1241 = vunpack.c.l.b16 %v1064
        %v1242 = vunpack.c.h.b16 %v1064
        %v1243 = vunpack.c.l.b16 %v1065
        %v1244 = vunpack.c.h.b16 %v1065
        %v1245 = vunpack.c.l.b16 %v1066
        %v1246 = vunpack.c.h.b16 %v1066
        %v1247 = vunpack.c.l.b16 %v1067
        %v1248 = vunpack.c.h.b16 %v1067
        %v1249 = vunpack.c.l.b16 %v1068
        %v1250 = vunpack.c.h.b16 %v1068
        %v1251 = vunpack.c.l.b16 %v1069
        %v1252 = vunpack.c.h.b16 %v1069
        %v1253 = vunpack.c.l.b16 %v1070
        %v1254 = vunpack.c.h.b16 %v1070
        %v1255 = vunpack.c.l.b16 %v1071
        %v1256 = vunpack.c.h.b16 %v1071
        %v1257 = vunpack.c.l.b16 %v1072
        %v1258 = vunpack.c.h.b16 %v1072
        %v1259 = vunpack.c.l.b16 %v1073
        %v1260 = vunpack.c.h.b16 %v1073
        %v1261 = vunpack.c.l.b16 %v1074
        %v1262 = vunpack.c.h.b16 %v1074
        %v1263 = vunpack.c.l.b16 %v1075
        %v1264 = vunpack.c.h.b16 %v1075
        %v1265 = vunpack.c.l.b16 %v1076
        %v1266 = vunpack.c.h.b16 %v1076
        %v1267 = vunpack.c.l.b16 %v1077
        %v1268 = vunpack.c.h.b16 %v1077
        %v1269 = vunpack.c.l.b16 %v1078
        %v1270 = vunpack.c.h.b16 %v1078
        %v1271 = vpack.c.b16 %v1151, %v1143
        %v1272 = vpack.c.b16 %v1152, %v1144
        %v1273 = vpack.c.b16 %v1153, %v1145
        %v1274 = vpack.c.b16 %v1154, %v1146
        %v1275 = vpack.c.b16 %v1155, %v1147
        %v1276 = vpack.c.b16 %v1156, %v1148
        %v1277 = vpack.c.b16 %v1157, %v1149
        %v1278 = vpack.c.b16 %v1158, %v1150
        %v1279 = vpack.c.b16 %v1167, %v1159
        %v1280 = vpack.c.b16 %v1168, %v1160
        %v1281 = vpack.c.b16 %v1169, %v1161
        %v1282 = vpack.c.b16 %v1170, %v1162
        %v1283 = vpack.c.b16 %v1171, %v1163
        %v1284 = vpack.c.b16 %v1172, %v1164
        %v1285 = vpack.c.b16 %v1173, %v1165
        %v1286 = vpack.c.b16 %v1174, %v1166
        %v1287 = vpack.c.b16 %v1183, %v1175
        %v1288 = vpack.c.b16 %v1184, %v1176
        %v1289 = vpack.c.b16 %v1185, %v1177
        %v1290 = vpack.c.b16 %v1186, %v1178
        %v1291 = vpack.c.b16 %v1187, %v1179
        %v1292 = vpack.c.b16 %v1188, %v1180
        %v1293 = vpack.c.b16 %v1189, %v1181
        %v1294 = vpack.c.b16 %v1190, %v1182
        %v1295 = vpack.c.b16 %v1199, %v1191
        %v1296 = vpack.c.b16 %v1200, %v1192
        %v1297 = vpack.c.b16 %v1201, %v1193
        %v1298 = vpack.c.b16 %v1202, %v1194
        %v1299 = vpack.c.b16 %v1203, %v1195
        %v1300 = vpack.c.b16 %v1204, %v1196
        %v1301 = vpack.c.b16 %v1205, %v1197
        %v1302 = vpack.c.b16 %v1206, %v1198
        %v1303 = vpack.c.b16 %v1215, %v1207
        %v1304 = vpack.c.b16 %v1216, %v1208
        %v1305 = vpack.c.b16 %v1217, %v1209
        %v1306 = vpack.c.b16 %v1218, %v1210
        %v1307 = vpack.c.b16 %v1219, %v1211
        %v1308 = vpack.c.b16 %v1220, %v1212
        %v1309 = vpack.c.b16 %v1221, %v1213
        %v1310 = vpack.c.b16 %v1222, %v1214
        %v1311 = vpack.c.b16 %v1231, %v1223
        %v1312 = vpack.c.b16 %v1232, %v1224
        %v1313 = vpack.c.b16 %v1233, %v1225
        %v1314 = vpack.c.b16 %v1234, %v1226
        %v1315 = vpack.c.b16 %v1235, %v1227
        %v1316 = vpack.c.b16 %v1236, %v1228
        %v1317 = vpack.c.b16 %v1237, %v1229
        %v1318 = vpack.c.b16 %v1238, %v1230
        %v1319 = vpack.c.b16 %v1247, %v1239
        %v1320 = vpack.c.b16 %v1248, %v1240
        %v1321 = vpack.c.b16 %v1249, %v1241
        %v1322 = vpack.c.b16 %v1250, %v1242
        %v1323 = vpack.c.b16 %v1251, %v1243
        %v1324 = vpack.c.b16 %v1252, %v1244
        %v1325 = vpack.c.b16 %v1253, %v1245
        %v1326 = vpack.c.b16 %v1254, %v1246
        %v1327 = vpack.c.b16 %v1263, %v1255
        %v1328 = vpack.c.b16 %v1264, %v1256
        %v1329 = vpack.c.b16 %v1265, %v1257
        %v1330 = vpack.c.b16 %v1266, %v1258
        %v1331 = vpack.c.b16 %v1267, %v1259
        %v1332 = vpack.c.b16 %v1268, %v1260
        %v1333 = vpack.c.b16 %v1269, %v1261
        %v1334 = vpack.c.b16 %v1270, %v1262
        %1399 = vmatpush.bf16.msra.mxu0 %v1327
        %1400 = vmatpush.bf16.msra.mxu0 %v1319
        %1401 = vmatpush.bf16.msra.mxu0 %v1311
        %1402 = vmatpush.bf16.msra.mxu0 %v1303
        %1403 = vmatpush.bf16.msra.mxu0 %v1295
        %1404 = vmatpush.bf16.msra.mxu0 %v1287
        %1405 = vmatpush.bf16.msra.mxu0 %v1279
        %1406 = vmatpush.bf16.msra.mxu0 %v1271
        %1407 = vmatmul.bf16.gmra.mxu0 %v1014
        %v1408 = vpop.f32.mrf.mxu0
        %v1409 = vadd.f32 0.0, %v1408
        %v1410 = vpop.f32.mrf.mxu0
        %1411 = vdwg.mxu0
        %1412 = vmatpush.bf16.msra.mxu0 %v1328
        %1413 = vmatpush.bf16.msra.mxu0 %v1320
        %1414 = vmatpush.bf16.msra.mxu0 %v1312
        %1415 = vmatpush.bf16.msra.mxu0 %v1304
        %1416 = vmatpush.bf16.msra.mxu0 %v1296
        %1417 = vmatpush.bf16.msra.mxu0 %v1288
        %1418 = vmatpush.bf16.msra.mxu0 %v1280
        %1419 = vmatpush.bf16.msra.mxu0 %v1272
        %1420 = vmatmul.bf16.gmra.mxu0 %v1014
        %v1421 = vpop.f32.mrf.mxu0
        %v1422 = vadd.f32 0.0, %v1421
        %v1423 = vpop.f32.mrf.mxu0
        %1424 = vdwg.mxu0
        %1425 = vmatpush.bf16.msra.mxu0 %v1329
        %1426 = vmatpush.bf16.msra.mxu0 %v1321
        %1427 = vmatpush.bf16.msra.mxu0 %v1313
        %1428 = vmatpush.bf16.msra.mxu0 %v1305
        %1429 = vmatpush.bf16.msra.mxu0 %v1297
        %1430 = vmatpush.bf16.msra.mxu0 %v1289
        %1431 = vmatpush.bf16.msra.mxu0 %v1281
        %1432 = vmatpush.bf16.msra.mxu0 %v1273
        %1433 = vmatmul.bf16.gmra.mxu0 %v1014
        %v1434 = vpop.f32.mrf.mxu0
        %v1435 = vadd.f32 0.0, %v1434
        %v1436 = vpop.f32.mrf.mxu0
        %1437 = vdwg.mxu0
        %1438 = vmatpush.bf16.msra.mxu0 %v1330
        %1439 = vmatpush.bf16.msra.mxu0 %v1322
        %1440 = vmatpush.bf16.msra.mxu0 %v1314
        %1441 = vmatpush.bf16.msra.mxu0 %v1306
        %1442 = vmatpush.bf16.msra.mxu0 %v1298
        %1443 = vmatpush.bf16.msra.mxu0 %v1290
        %1444 = vmatpush.bf16.msra.mxu0 %v1282
        %1445 = vmatpush.bf16.msra.mxu0 %v1274
        %1446 = vmatmul.bf16.gmra.mxu0 %v1014
        %v1447 = vpop.f32.mrf.mxu0
        %v1448 = vadd.f32 0.0, %v1447
        %v1449 = vpop.f32.mrf.mxu0
        %1450 = vdwg.mxu0
        %1451 = vmatpush.bf16.msra.mxu0 %v1331
        %1452 = vmatpush.bf16.msra.mxu0 %v1323
        %1453 = vmatpush.bf16.msra.mxu0 %v1315
        %1454 = vmatpush.bf16.msra.mxu0 %v1307
        %1455 = vmatpush.bf16.msra.mxu0 %v1299
        %1456 = vmatpush.bf16.msra.mxu0 %v1291
        %1457 = vmatpush.bf16.msra.mxu0 %v1283
        %1458 = vmatpush.bf16.msra.mxu0 %v1275
        %1459 = vmatmul.bf16.gmra.mxu0 %v1014
        %v1460 = vpop.f32.mrf.mxu0
        %v1461 = vadd.f32 0.0, %v1460
        %v1462 = vpop.f32.mrf.mxu0
        %1463 = vdwg.mxu0
        %1464 = vmatpush.bf16.msra.mxu0 %v1332
        %1465 = vmatpush.bf16.msra.mxu0 %v1324
        %1466 = vmatpush.bf16.msra.mxu0 %v1316
        %1467 = vmatpush.bf16.msra.mxu0 %v1308
        %1468 = vmatpush.bf16.msra.mxu0 %v1300
        %1469 = vmatpush.bf16.msra.mxu0 %v1292
        %1470 = vmatpush.bf16.msra.mxu0 %v1284
        %1471 = vmatpush.bf16.msra.mxu0 %v1276
        %1472 = vmatmul.bf16.gmra.mxu0 %v1014
        %v1473 = vpop.f32.mrf.mxu0
        %v1474 = vadd.f32 0.0, %v1473
        %v1475 = vpop.f32.mrf.mxu0
        %1476 = vdwg.mxu0
        %1477 = vmatpush.bf16.msra.mxu0 %v1333
        %1478 = vmatpush.bf16.msra.mxu0 %v1325
        %1479 = vmatpush.bf16.msra.mxu0 %v1317
        %1480 = vmatpush.bf16.msra.mxu0 %v1309
        %1481 = vmatpush.bf16.msra.mxu0 %v1301
        %1482 = vmatpush.bf16.msra.mxu0 %v1293
        %1483 = vmatpush.bf16.msra.mxu0 %v1285
        %1484 = vmatpush.bf16.msra.mxu0 %v1277
        %1485 = vmatmul.bf16.gmra.mxu0 %v1014
        %v1486 = vpop.f32.mrf.mxu0
        %v1487 = vadd.f32 0.0, %v1486
        %v1488 = vpop.f32.mrf.mxu0
        %1489 = vdwg.mxu0
        %1490 = vmatpush.bf16.msra.mxu0 %v1334
        %1491 = vmatpush.bf16.msra.mxu0 %v1326
        %1492 = vmatpush.bf16.msra.mxu0 %v1318
        %1493 = vmatpush.bf16.msra.mxu0 %v1310
        %1494 = vmatpush.bf16.msra.mxu0 %v1302
        %1495 = vmatpush.bf16.msra.mxu0 %v1294
        %1496 = vmatpush.bf16.msra.mxu0 %v1286
        %1497 = vmatpush.bf16.msra.mxu0 %v1278
        %1498 = vmatmul.bf16.gmra.mxu0 %v1014
        %v1499 = vpop.f32.mrf.mxu0
        %v1500 = vadd.f32 0.0, %v1499
        %v1501 = vpop.f32.mrf.mxu0
        %1502 = vdwg.mxu0
        %v1503 = vsub.f32 0.0, %v1409
        %v1504 = vsub.f32 0.0, %v1422
        %v1505 = vsub.f32 0.0, %v1435
        %v1506 = vsub.f32 0.0, %v1448
        %v1507 = vmul.f32 %v1503, 1.442695
        %v1508 = vpow.pop %v1507
        %v1509 = vmul.f32 %v1504, 1.442695
        %v1510 = vpow.pop %v1509
        %v1511 = vmul.f32 %v1505, 1.442695
        %v1512 = vpow.pop %v1511
        %v1513 = vmul.f32 %v1506, 1.442695
        %v1514 = vpow.pop %v1513
        %v1515 = vadd.f32 %v1508, 1.0
        %v1516 = vadd.f32 %v1510, 1.0
        %v1517 = vadd.f32 %v1512, 1.0
        %v1518 = vadd.f32 %v1514, 1.0
        %v1519 = vrcp.pop %v1515
        %v1520 = vmul.f32 %v1515, %v1519
        %v1521 = vsub.f32 1.0, %v1520
        %v1522 = vmul.f32 %v1519, %v1521
        %v1523 = vadd.f32 %v1519, %v1522
        %vm1524 = vweird.f32 %v1515
        %vm1525 = vweird.f32 %v1519
        %vm1526 = vmor %vm1524, %vm1525
        %v1527 = vsel %vm1526, %v1519, %v1523
        %v1528 = vand.u32 2147483647, %v1515
        %vm1529 = vcmp.eq.f32.partialorder %v1528, 8.507059e+37
        %v1530 = vand.u32 %v1515, 2147483648
        %v1531 = vor.u32 1.1754944e-38, %v1530
        %v1532 = vsel %vm1529, %v1531, %v1527
        %v1533 = vmul.f32 1.0, %v1532
        %v1534 = vrcp.pop %v1516
        %v1535 = vmul.f32 %v1516, %v1534
        %v1536 = vsub.f32 1.0, %v1535
        %v1537 = vmul.f32 %v1534, %v1536
        %v1538 = vadd.f32 %v1534, %v1537
        %vm1539 = vweird.f32 %v1516
        %vm1540 = vweird.f32 %v1534
        %vm1541 = vmor %vm1539, %vm1540
        %v1542 = vsel %vm1541, %v1534, %v1538
        %v1543 = vand.u32 2147483647, %v1516
        %vm1544 = vcmp.eq.f32.partialorder %v1543, 8.507059e+37
        %v1545 = vand.u32 %v1516, 2147483648
        %v1546 = vor.u32 1.1754944e-38, %v1545
        %v1547 = vsel %vm1544, %v1546, %v1542
        %v1548 = vmul.f32 1.0, %v1547
        %v1549 = vrcp.pop %v1517
        %v1550 = vmul.f32 %v1517, %v1549
        %v1551 = vsub.f32 1.0, %v1550
        %v1552 = vmul.f32 %v1549, %v1551
        %v1553 = vadd.f32 %v1549, %v1552
        %vm1554 = vweird.f32 %v1517
        %vm1555 = vweird.f32 %v1549
        %vm1556 = vmor %vm1554, %vm1555
        %v1557 = vsel %vm1556, %v1549, %v1553
        %v1558 = vand.u32 2147483647, %v1517
        %vm1559 = vcmp.eq.f32.partialorder %v1558, 8.507059e+37
        %v1560 = vand.u32 %v1517, 2147483648
        %v1561 = vor.u32 1.1754944e-38, %v1560
        %v1562 = vsel %vm1559, %v1561, %v1557
        %v1563 = vmul.f32 1.0, %v1562
        %v1564 = vrcp.pop %v1518
        %v1565 = vmul.f32 %v1518, %v1564
        %v1566 = vsub.f32 1.0, %v1565
        %v1567 = vmul.f32 %v1564, %v1566
        %v1568 = vadd.f32 %v1564, %v1567
        %vm1569 = vweird.f32 %v1518
        %vm1570 = vweird.f32 %v1564
        %vm1571 = vmor %vm1569, %vm1570
        %v1572 = vsel %vm1571, %v1564, %v1568
        %v1573 = vand.u32 2147483647, %v1518
        %vm1574 = vcmp.eq.f32.partialorder %v1573, 8.507059e+37
        %v1575 = vand.u32 %v1518, 2147483648
        %v1576 = vor.u32 1.1754944e-38, %v1575
        %v1577 = vsel %vm1574, %v1576, %v1572
        %v1578 = vmul.f32 1.0, %v1577
        %v1579 = vmul.f32 %v1409, %v1533
        %v1580 = vmul.f32 %v1422, %v1548
        %v1581 = vmul.f32 %v1435, %v1563
        %v1582 = vmul.f32 %v1448, %v1578
        %v1583 = vmul.f32 %v1579, %v1461
        %v1584 = vmul.f32 %v1580, %v1474
        %v1585 = vmul.f32 %v1581, %v1487
        %v1586 = vmul.f32 %v1582, %v1500
        %v1587 = vpack.c.bf16 %v1583, %v1583
        %v1588 = vpack.c.bf16 %v1584, %v1584
        %v1589 = vpack.c.bf16 %v1585, %v1585
        %v1590 = vpack.c.bf16 %v1586, %v1586
        %v1591 = vld [vmem:[#allocation14] sm:$0xf]
        %v1592 = vld [vmem:[#allocation14 + $0x4] sm:$0xf]
        %v1593 = vld [vmem:[#allocation14 + $0x8] sm:$0xf]
        %v1594 = vld [vmem:[#allocation14 + $0xc] sm:$0xf]
        %v1595 = vld [vmem:[#allocation14 + $0x10] sm:$0xf]
        %v1596 = vld [vmem:[#allocation14 + $0x14] sm:$0xf]
        %v1597 = vld [vmem:[#allocation14 + $0x18] sm:$0xf]
        %v1598 = vld [vmem:[#allocation14 + $0x1c] sm:$0xf]
        %v1599 = vld [vmem:[#allocation14 + $0x20] sm:$0xf]
        %v1600 = vld [vmem:[#allocation14 + $0x24] sm:$0xf]
        %v1601 = vld [vmem:[#allocation14 + $0x28] sm:$0xf]
        %v1602 = vld [vmem:[#allocation14 + $0x2c] sm:$0xf]
        %v1603 = vld [vmem:[#allocation14 + $0x30] sm:$0xf]
        %v1604 = vld [vmem:[#allocation14 + $0x34] sm:$0xf]
        %v1605 = vld [vmem:[#allocation14 + $0x38] sm:$0xf]
        %v1606 = vld [vmem:[#allocation14 + $0x3c] sm:$0xf]
        %v1607 = vld [vmem:[#allocation14 + $0x40] sm:$0xf]
        %v1608 = vld [vmem:[#allocation14 + $0x44] sm:$0xf]
        %v1609 = vld [vmem:[#allocation14 + $0x48] sm:$0xf]
        %v1610 = vld [vmem:[#allocation14 + $0x4c] sm:$0xf]
        %v1611 = vld [vmem:[#allocation14 + $0x50] sm:$0xf]
        %v1612 = vld [vmem:[#allocation14 + $0x54] sm:$0xf]
        %v1613 = vld [vmem:[#allocation14 + $0x58] sm:$0xf]
        %v1614 = vld [vmem:[#allocation14 + $0x5c] sm:$0xf]
        %v1615 = vld [vmem:[#allocation14 + $0x60] sm:$0xf]
        %v1616 = vld [vmem:[#allocation14 + $0x64] sm:$0xf]
        %v1617 = vld [vmem:[#allocation14 + $0x68] sm:$0xf]
        %v1618 = vld [vmem:[#allocation14 + $0x6c] sm:$0xf]
        %v1619 = vld [vmem:[#allocation14 + $0x70] sm:$0xf]
        %v1620 = vld [vmem:[#allocation14 + $0x74] sm:$0xf]
        %v1621 = vld [vmem:[#allocation14 + $0x78] sm:$0xf]
        %v1622 = vld [vmem:[#allocation14 + $0x7c] sm:$0xf]
        %v1623 = vld [vmem:[#allocation14 + $0x80] sm:$0xf]
        %v1624 = vld [vmem:[#allocation14 + $0x84] sm:$0xf]
        %v1625 = vld [vmem:[#allocation14 + $0x88] sm:$0xf]
        %v1626 = vld [vmem:[#allocation14 + $0x8c] sm:$0xf]
        %v1627 = vld [vmem:[#allocation14 + $0x90] sm:$0xf]
        %v1628 = vld [vmem:[#allocation14 + $0x94] sm:$0xf]
        %v1629 = vld [vmem:[#allocation14 + $0x98] sm:$0xf]
        %v1630 = vld [vmem:[#allocation14 + $0x9c] sm:$0xf]
        %v1631 = vld [vmem:[#allocation14 + $0xa0] sm:$0xf]
        %v1632 = vld [vmem:[#allocation14 + $0xa4] sm:$0xf]
        %v1633 = vld [vmem:[#allocation14 + $0xa8] sm:$0xf]
        %v1634 = vld [vmem:[#allocation14 + $0xac] sm:$0xf]
        %v1635 = vld [vmem:[#allocation14 + $0xb0] sm:$0xf]
        %v1636 = vld [vmem:[#allocation14 + $0xb4] sm:$0xf]
        %v1637 = vld [vmem:[#allocation14 + $0xb8] sm:$0xf]
        %v1638 = vld [vmem:[#allocation14 + $0xbc] sm:$0xf]
        %v1639 = vld [vmem:[#allocation14 + $0xc0] sm:$0xf]
        %v1640 = vld [vmem:[#allocation14 + $0xc4] sm:$0xf]
        %v1641 = vld [vmem:[#allocation14 + $0xc8] sm:$0xf]
        %v1642 = vld [vmem:[#allocation14 + $0xcc] sm:$0xf]
        %v1643 = vld [vmem:[#allocation14 + $0xd0] sm:$0xf]
        %v1644 = vld [vmem:[#allocation14 + $0xd4] sm:$0xf]
        %v1645 = vld [vmem:[#allocation14 + $0xd8] sm:$0xf]
        %v1646 = vld [vmem:[#allocation14 + $0xdc] sm:$0xf]
        %v1647 = vld [vmem:[#allocation14 + $0xe0] sm:$0xf]
        %v1648 = vld [vmem:[#allocation14 + $0xe4] sm:$0xf]
        %v1649 = vld [vmem:[#allocation14 + $0xe8] sm:$0xf]
        %v1650 = vld [vmem:[#allocation14 + $0xec] sm:$0xf]
        %v1651 = vld [vmem:[#allocation14 + $0xf0] sm:$0xf]
        %v1652 = vld [vmem:[#allocation14 + $0xf4] sm:$0xf]
        %v1653 = vld [vmem:[#allocation14 + $0xf8] sm:$0xf]
        %v1654 = vld [vmem:[#allocation14 + $0xfc] sm:$0xf]
        %v1719 = vunpack.c.l.b16 %v1591
        %v1720 = vunpack.c.l.b16 %v1592
        %v1721 = vunpack.c.l.b16 %v1593
        %v1722 = vunpack.c.l.b16 %v1594
        %v1723 = vunpack.c.l.b16 %v1595
        %v1724 = vunpack.c.l.b16 %v1596
        %v1725 = vunpack.c.l.b16 %v1597
        %v1726 = vunpack.c.l.b16 %v1598
        %v1727 = vunpack.c.l.b16 %v1599
        %v1728 = vunpack.c.l.b16 %v1600
        %v1729 = vunpack.c.l.b16 %v1601
        %v1730 = vunpack.c.l.b16 %v1602
        %v1731 = vunpack.c.l.b16 %v1603
        %v1732 = vunpack.c.l.b16 %v1604
        %v1733 = vunpack.c.l.b16 %v1605
        %v1734 = vunpack.c.l.b16 %v1606
        %v1735 = vunpack.c.l.b16 %v1607
        %v1736 = vunpack.c.l.b16 %v1608
        %v1737 = vunpack.c.l.b16 %v1609
        %v1738 = vunpack.c.l.b16 %v1610
        %v1739 = vunpack.c.l.b16 %v1611
        %v1740 = vunpack.c.l.b16 %v1612
        %v1741 = vunpack.c.l.b16 %v1613
        %v1742 = vunpack.c.l.b16 %v1614
        %v1743 = vunpack.c.l.b16 %v1615
        %v1744 = vunpack.c.l.b16 %v1616
        %v1745 = vunpack.c.l.b16 %v1617
        %v1746 = vunpack.c.l.b16 %v1618
        %v1747 = vunpack.c.l.b16 %v1619
        %v1748 = vunpack.c.l.b16 %v1620
        %v1749 = vunpack.c.l.b16 %v1621
        %v1750 = vunpack.c.l.b16 %v1622
        %v1751 = vunpack.c.l.b16 %v1623
        %v1752 = vunpack.c.l.b16 %v1624
        %v1753 = vunpack.c.l.b16 %v1625
        %v1754 = vunpack.c.l.b16 %v1626
        %v1755 = vunpack.c.l.b16 %v1627
        %v1756 = vunpack.c.l.b16 %v1628
        %v1757 = vunpack.c.l.b16 %v1629
        %v1758 = vunpack.c.l.b16 %v1630
        %v1759 = vunpack.c.l.b16 %v1631
        %v1760 = vunpack.c.l.b16 %v1632
        %v1761 = vunpack.c.l.b16 %v1633
        %v1762 = vunpack.c.l.b16 %v1634
        %v1763 = vunpack.c.l.b16 %v1635
        %v1764 = vunpack.c.l.b16 %v1636
        %v1765 = vunpack.c.l.b16 %v1637
        %v1766 = vunpack.c.l.b16 %v1638
        %v1767 = vunpack.c.l.b16 %v1639
        %v1768 = vunpack.c.l.b16 %v1640
        %v1769 = vunpack.c.l.b16 %v1641
        %v1770 = vunpack.c.l.b16 %v1642
        %v1771 = vunpack.c.l.b16 %v1643
        %v1772 = vunpack.c.l.b16 %v1644
        %v1773 = vunpack.c.l.b16 %v1645
        %v1774 = vunpack.c.l.b16 %v1646
        %v1775 = vunpack.c.l.b16 %v1647
        %v1776 = vunpack.c.l.b16 %v1648
        %v1777 = vunpack.c.l.b16 %v1649
        %v1778 = vunpack.c.l.b16 %v1650
        %v1779 = vunpack.c.l.b16 %v1651
        %v1780 = vunpack.c.l.b16 %v1652
        %v1781 = vunpack.c.l.b16 %v1653
        %v1782 = vunpack.c.l.b16 %v1654
        %v1783 = vpack.c.b16 %v1720, %v1719
        %v1784 = vpack.c.b16 %v1722, %v1721
        %v1785 = vpack.c.b16 %v1724, %v1723
        %v1786 = vpack.c.b16 %v1726, %v1725
        %v1787 = vpack.c.b16 %v1728, %v1727
        %v1788 = vpack.c.b16 %v1730, %v1729
        %v1789 = vpack.c.b16 %v1732, %v1731
        %v1790 = vpack.c.b16 %v1734, %v1733
        %v1791 = vpack.c.b16 %v1736, %v1735
        %v1792 = vpack.c.b16 %v1738, %v1737
        %v1793 = vpack.c.b16 %v1740, %v1739
        %v1794 = vpack.c.b16 %v1742, %v1741
        %v1795 = vpack.c.b16 %v1744, %v1743
        %v1796 = vpack.c.b16 %v1746, %v1745
        %v1797 = vpack.c.b16 %v1748, %v1747
        %v1798 = vpack.c.b16 %v1750, %v1749
        %v1799 = vpack.c.b16 %v1752, %v1751
        %v1800 = vpack.c.b16 %v1754, %v1753
        %v1801 = vpack.c.b16 %v1756, %v1755
        %v1802 = vpack.c.b16 %v1758, %v1757
        %v1803 = vpack.c.b16 %v1760, %v1759
        %v1804 = vpack.c.b16 %v1762, %v1761
        %v1805 = vpack.c.b16 %v1764, %v1763
        %v1806 = vpack.c.b16 %v1766, %v1765
        %v1807 = vpack.c.b16 %v1768, %v1767
        %v1808 = vpack.c.b16 %v1770, %v1769
        %v1809 = vpack.c.b16 %v1772, %v1771
        %v1810 = vpack.c.b16 %v1774, %v1773
        %v1811 = vpack.c.b16 %v1776, %v1775
        %v1812 = vpack.c.b16 %v1778, %v1777
        %v1813 = vpack.c.b16 %v1780, %v1779
        %v1814 = vpack.c.b16 %v1782, %v1781
        %1847 = vmatpush.bf16.msra.mxu0 %v1790
        %1848 = vmatpush.bf16.msra.mxu0 %v1789
        %1849 = vmatpush.bf16.msra.mxu0 %v1788
        %1850 = vmatpush.bf16.msra.mxu0 %v1787
        %1851 = vmatpush.bf16.msra.mxu0 %v1786
        %1852 = vmatpush.bf16.msra.mxu0 %v1785
        %1853 = vmatpush.bf16.msra.mxu0 %v1784
        %1854 = vmatpush.bf16.msra.mxu0 %v1783
        %1855 = vmatmul.bf16.gmra.mxu0 %v1587
        %v1856 = vpop.f32.mrf.mxu0
        %v1857 = vadd.f32 0.0, %v1856
        %v1858 = vpop.f32.mrf.mxu0
        %1859 = vdwg.mxu0
        %1860 = vmatpush.bf16.msra.mxu0 %v1798
        %1861 = vmatpush.bf16.msra.mxu0 %v1797
        %1862 = vmatpush.bf16.msra.mxu0 %v1796
        %1863 = vmatpush.bf16.msra.mxu0 %v1795
        %1864 = vmatpush.bf16.msra.mxu0 %v1794
        %1865 = vmatpush.bf16.msra.mxu0 %v1793
        %1866 = vmatpush.bf16.msra.mxu0 %v1792
        %1867 = vmatpush.bf16.msra.mxu0 %v1791
        %1868 = vmatmul.bf16.gmra.mxu0 %v1588
        %v1869 = vpop.f32.mrf.mxu0
        %v1870 = vadd.f32 %v1857, %v1869
        %v1871 = vpop.f32.mrf.mxu0
        %1872 = vdwg.mxu0
        %1873 = vmatpush.bf16.msra.mxu0 %v1806
        %1874 = vmatpush.bf16.msra.mxu0 %v1805
        %1875 = vmatpush.bf16.msra.mxu0 %v1804
        %1876 = vmatpush.bf16.msra.mxu0 %v1803
        %1877 = vmatpush.bf16.msra.mxu0 %v1802
        %1878 = vmatpush.bf16.msra.mxu0 %v1801
        %1879 = vmatpush.bf16.msra.mxu0 %v1800
        %1880 = vmatpush.bf16.msra.mxu0 %v1799
        %1881 = vmatmul.bf16.gmra.mxu0 %v1589
        %v1882 = vpop.f32.mrf.mxu0
        %v1883 = vadd.f32 %v1870, %v1882
        %v1884 = vpop.f32.mrf.mxu0
        %1885 = vdwg.mxu0
        %1886 = vmatpush.bf16.msra.mxu0 %v1814
        %1887 = vmatpush.bf16.msra.mxu0 %v1813
        %1888 = vmatpush.bf16.msra.mxu0 %v1812
        %1889 = vmatpush.bf16.msra.mxu0 %v1811
        %1890 = vmatpush.bf16.msra.mxu0 %v1810
        %1891 = vmatpush.bf16.msra.mxu0 %v1809
        %1892 = vmatpush.bf16.msra.mxu0 %v1808
        %1893 = vmatpush.bf16.msra.mxu0 %v1807
        %1894 = vmatmul.bf16.gmra.mxu0 %v1590
        %v1895 = vpop.f32.mrf.mxu0
        %v1896 = vadd.f32 %v1883, %v1895
        %v1897 = vpop.f32.mrf.mxu0
        %1898 = vdwg.mxu0
        %v1899 = vadd.f32 %v992, %v1896
        %1900 = vst [vmem:[%s484] sm:$0xff] %v1899
        %s1901 = sand.u32 %s254, 1
        %s1902 = scalar_lea.sflag [#allocation4], %s1901
        %s1903 = sand.u32 %s254, 1
        %s1904 = smul.addr %s1903, 8
        %s1905 = scalar_lea.vmem [#allocation16], %s1904
        // Predicated region
        $region93: #{tpu_custom_call.1} parent=59 // pred_check
          %p1906 = pneg %p264
        $region94: #{tpu_custom_call.1} parent=59 // pred_check_branch
          %1908 = sbr.rel (%p1906) target = $region96
        $region95: #{tpu_custom_call.1} parent=59 // pred_region
          %1910 = vsyncadd %s1902, 0
          %s1911 = smul.addr %s31, 8
          %s1912 = scalar_lea.hbm %s10, %s1911
          %s1914 = sshll.u32 %s1905, 4
          %s1915 = int_to_ptr.vmem [resolvable:$true] %s1914
          %s1916 = sshll.u32 %s1912, 4
          %s1917 = int_to_ptr.hbm [resolvable:$true] %s1916
          %1919 = dma.vmem_to_hbm [thread:$0]  %s1915, 128, %s1917, %s1902
        $region96: #{tpu_custom_call.1} parent=59 // pred_fallthru
          _
      $region60: #{tpu_custom_call.1} parent=5 // pred_fallthru
        _
      %p1920 = scmp.le.s32.totalorder 2, %s26
      // Predicated region
      $region97: #{tpu_custom_call.1} parent=5 // pred_check
        %p1921 = pneg %p1920
      $region98: #{tpu_custom_call.1} parent=5 // pred_check_branch
        %1923 = sbr.rel (%p1921) target = $region100
      $region99: #{tpu_custom_call.1} parent=5 // pred_region
        %s1924 = ssub.s32 %s26, 2
        // Predicated region
        $region101: #{tpu_custom_call.1} parent=99 // pred_check
          %p1925 = pneg %p270
        $region102: #{tpu_custom_call.1} parent=99 // pred_check_branch
          %1927 = sbr.rel (%p1925) target = $region104
        $region103: #{tpu_custom_call.1} parent=99 // pred_region
          %s1928 = sand.u32 %s255, 1
          %s1929 = scalar_lea.sflag [#allocation4], %s1928
          %s1930 = sand.u32 %s255, 1
          %s1931 = smul.addr %s1930, 8
          %s1932 = scalar_lea.vmem [#allocation16], %s1931
          %1934 = dma.done %s1929, 128
        $region104: #{tpu_custom_call.1} parent=99 // pred_fallthru
          _
      $region100: #{tpu_custom_call.1} parent=5 // pred_fallthru
        _
    $region6: #{tpu_custom_call.1} parent=1 // loop_footer
      %s30 = sadd.s32 1, %s26
    $region7: #{tpu_custom_call.1} parent=1 // loop_footer_branch
      %25 = sbr.rel target = $region3
    $region8: #{tpu_custom_call.1} parent=1 // loop_exit
      _
    %1935 = vsyncpa [#allocation3], 1
    %s1936 = scalar_lea.sflag [#allocation3], 1
    %1937 = vsyncpa %s1936, 1
    %1938 = vsyncpa [#allocation6], 1
    %1939 = vsyncpa [#allocation9], 1
    %1940 = vsyncpa [#allocation12], 1
    %1941 = vsyncpa [#allocation15], 1
    %1942 = vsyncpa [#allocation4], 1
    %s1943 = scalar_lea.sflag [#allocation4], 1
    %1944 = vsyncpa %s1943, 1

</llo_original>
